<compile_context>
chip_gen: v7x
topology: tpu7x:2x2x1
jax: 0.10.0
libtpu: 0.0.40
codegen_flags: <defaults>
</compile_context>

<pallas_src>
import functools
import math

import jax
import jax.numpy as jnp
import numpy as np
from jax.experimental import pallas as pl
from jax.experimental.pallas import tpu as pltpu

NEG_SLOPE = 0.01  # nn.LeakyReLU default negative slope


def _round_up(x, m):
    return (x + m - 1) // m * m


# ----------------------------------------------------------------------------
# Kernel
# ----------------------------------------------------------------------------
def kan_linear_kernel(x_ref, tab_ref, wsp_ref, wb_ref, o_ref, *,
                      in_features, spline_order, n_blocks):
    """One batch tile of the KANLinear forward.

    x_ref   : (TB, IN)                 f32  input tile
    tab_ref : (2 + 3*order, W*IN)      f32  lane-packed knot / reciprocal table
    wsp_ref : (W*IN, OUTp)             bf16 packed (block-major) spline weight
    wb_ref  : (IN, OUTp)               f32  transposed base weight
    o_ref   : (TB, OUTp)               f32  output tile
    """
    IN = in_features
    W = n_blocks           # n_knots - 1 packed blocks
    L = W * IN

    x = x_ref[...]                                           # (TB, IN) f32

    # Replicate x along lanes once: block j of x_rep is a copy of x.
    x_rep = jnp.concatenate([x] * W, axis=-1)                # (TB, L)

    g_lo = tab_ref[0:1, :]                                   # grid[j]    (1, L)
    g_hi0 = tab_ref[1:2, :]                                  # grid[j+1]  (1, L)

    # ---- order-0 bases for all W blocks at once (full-lane VPU ops) -------
    # Strict `x < grid[j+1]` matches the PyTorch reference (inputs exactly at
    # the right grid boundary get zero spline contribution).
    bases = jnp.logical_and(x_rep >= g_lo, x_rep < g_hi0).astype(jnp.float32)

    # Hoisted: (x - grid[j]) is the same for every recursion level.
    x_lo = x_rep - g_lo                                      # (TB, L)

    # ---- Cox-de Boor recursion, lane packed --------------------------------
    for k in range(1, spline_order + 1):
        r = 2 + 3 * (k - 1)
        inv_l = tab_ref[r:r + 1, :]       # 1/(grid[j+k]   - grid[j]  ), 0 if invalid
        g_hi = tab_ref[r + 1:r + 2, :]    #    grid[j+k+1]
        inv_r = tab_ref[r + 2:r + 3, :]   # 1/(grid[j+k+1] - grid[j+1]), 0 if invalid
        # bases[j+1] -> slot j via an XLU lane rotation.  The wrapped-around
        # lanes only feed invalid blocks, which are killed by inv_* == 0.
        shifted = pltpu.roll(bases, shift=L - IN, axis=1)
        bases = x_lo * inv_l * bases + (g_hi - x_rep) * inv_r * shifted

    # ---- base (linear) branch: LeakyReLU, kept in f32 for accuracy ---------
    act = jnp.where(x >= 0, x, NEG_SLOPE * x)                # (TB, IN) f32

    # ---- two MXU dots: big bf16 spline dot (K = W*IN) + small f32 base dot -
    spline = jnp.dot(bases.astype(jnp.bfloat16), wsp_ref[...],
                     preferred_element_type=jnp.float32)     # (TB, OUTp)
    base = jnp.dot(act, wb_ref[...],
                   preferred_element_type=jnp.float32)       # (TB, OUTp)
    o_ref[...] = (spline + base).astype(o_ref.dtype)


# ----------------------------------------------------------------------------
# One-time parameter packing (run at parameter-load time, not per call)
# ----------------------------------------------------------------------------
def pack_kan_params(grid, base_weight, spline_weight, spline_scaler, *,
                    grid_size, spline_order):
    g = np.asarray(grid, np.float32)                          # (IN, n_knots)
    bw = np.asarray(base_weight, np.float32)                  # (OUT, IN)
    sw = np.asarray(spline_weight, np.float32)                # (OUT, IN, C)
    sc = np.asarray(spline_scaler, np.float32)                # (OUT, IN)

    OUT, IN = bw.shape
    C = grid_size + spline_order
    n_knots = grid_size + 2 * spline_order + 1
    W = n_knots - 1
    L = W * IN
    OUTp = _round_up(OUT, 128)   # lane-dense stores; see note on packing
                                 # several small-OUT heads to fill 256 MXU cols

    def safe_recip(d):
        # Guard (near-)duplicate knots in adaptive grids: B-spline 0/0 terms
        # are treated as 0 (the PyTorch reference would emit inf/nan there).
        return np.where(np.abs(d) > 1e-12,
                        1.0 / np.where(d == 0, 1.0, d), 0.0).astype(np.float32)

    def pack(fn, valid_width):
        row = np.zeros((L,), np.float32)
        for j in range(valid_width):
            row[j * IN:(j + 1) * IN] = fn(j)
        return row

    rows = [pack(lambda j: g[:, j], W),          # grid[j]
            pack(lambda j: g[:, j + 1], W)]      # grid[j+1]
    for k in range(1, spline_order + 1):
        wk = n_knots - 1 - k                     # valid block count at level k
        rows.append(pack(lambda j, k=k: safe_recip(g[:, j + k] - g[:, j]), wk))
        rows.append(pack(lambda j, k=k: g[:, j + k + 1], wk))
        rows.append(pack(lambda j, k=k: safe_recip(g[:, j + k + 1] - g[:, j + 1]), wk))
    tab = jnp.asarray(np.stack(rows, axis=0), jnp.float32)   # (2+3*order, L)

    # Spline weight: scale, transpose to the packed block-major K layout
    # (row index c*IN + i), zero-pad the unused trailing blocks + OUT, bf16.
    ws = sw * sc[:, :, None]                                   # (OUT, IN, C)
    w_sp = np.zeros((L, OUTp), np.float32)
    w_sp[:C * IN, :OUT] = np.transpose(ws, (2, 1, 0)).reshape(C * IN, OUT)
    w_sp = jnp.asarray(w_sp, jnp.bfloat16)                     # (W*IN, OUTp)

    # Base weight stays f32 (full-precision linear branch).
    w_b = np.zeros((IN, OUTp), np.float32)
    w_b[:, :OUT] = bw.T
    w_b = jnp.asarray(w_b, jnp.float32)                        # (IN, OUTp)

    return tab, w_sp, w_b


# ----------------------------------------------------------------------------
# Forward wrapper
# ----------------------------------------------------------------------------
def kan_linear_forward(x, tab, w_sp, w_b, *, grid_size, spline_order,
                       out_features):
    """Pallas-backed KANLinear forward.  x: (B, IN) -> (B, out_features)."""
    B, IN = x.shape
    C = grid_size + spline_order
    n_knots = grid_size + 2 * spline_order + 1
    W = n_knots - 1
    L = W * IN
    OUTp = w_sp.shape[1]

    # Batch tiling: tiles up to 512 rows (~1.2 KiB/row working set), but keep
    # an even number of grid steps when B is large enough so the "parallel"
    # batch axis can be sharded across v7x's two TensorCores.
    TB_MAX = 512
    if B <= 16:
        TB = _round_up(B, 8)
    else:
        steps = max(2, pl.cdiv(B, TB_MAX))
        steps += steps % 2
        TB = _round_up(pl.cdiv(B, steps), 8)
    Bp = _round_up(B, TB)
    if Bp != B:
        x = jnp.pad(x, ((0, Bp - B), (0, 0)))
    x = x.astype(jnp.float32)

    kernel = functools.partial(kan_linear_kernel, in_features=IN,
                               spline_order=spline_order, n_blocks=W)

    # Honest (unpadded) cost: the kernel is VPU-bound, the dots are tiny.
    flops = int(2 * B * C * IN * out_features          # spline dot
                + 2 * B * IN * out_features            # base dot
                + B * L * (4 + 7 * spline_order))      # Cox-de Boor VPU work
    bytes_accessed = int(Bp * IN * 4 + L * OUTp * 2 + IN * OUTp * 4
                         + tab.size * 4 + Bp * OUTp * 4)

    out = pl.pallas_call(
        kernel,
        out_shape=jax.ShapeDtypeStruct((Bp, OUTp), jnp.float32),
        grid=(Bp // TB,),
        in_specs=[
            pl.BlockSpec((TB, IN), lambda i: (i, 0)),        # x tile (pipelined)
            pl.BlockSpec(tab.shape, lambda i: (0, 0)),       # packed tables
            pl.BlockSpec(w_sp.shape, lambda i: (0, 0)),      # spline weight
            pl.BlockSpec(w_b.shape, lambda i: (0, 0)),       # base weight
        ],
        out_specs=pl.BlockSpec((TB, OUTp), lambda i: (i, 0)),
        compiler_params=pltpu.CompilerParams(
            dimension_semantics=("parallel",)),
        cost_estimate=pl.CostEstimate(flops=flops, transcendentals=0,
                                      bytes_accessed=bytes_accessed),
    )(x, tab, w_sp, w_b)

    return out[:B, :out_features]


# ----------------------------------------------------------------------------
# Pure-JAX reference mirroring the PyTorch forward, for validation
# ----------------------------------------------------------------------------
def kan_linear_ref(x, grid, base_weight, spline_weight, spline_scaler,
                   grid_size, spline_order):
    act = jnp.where(x >= 0, x, NEG_SLOPE * x)
    base_out = act @ base_weight.T
    xe = x[:, :, None]
    g = grid
    bases = ((xe >= g[:, :-1]) & (xe < g[:, 1:])).astype(x.dtype)
    for k in range(1, spline_order + 1):
        bases = ((xe - g[:, :-(k + 1)]) / (g[:, k:-1] - g[:, :-(k + 1)])
                 * bases[:, :, :-1]
                 + (g[:, k + 1:] - xe) / (g[:, k + 1:] - g[:, 1:-k])
                 * bases[:, :, 1:])
    ws = spline_weight * spline_scaler[:, :, None]
    spline_out = bases.reshape(x.shape[0], -1) @ ws.reshape(ws.shape[0], -1).T
    return base_out + spline_out


if __name__ == "__main__":
    B, IN, OUT = 256, 32, 16
    grid_size, spline_order = 4, 2
    grid_range = (-1.0, 1.0)

    key = jax.random.PRNGKey(0)
    kx, kb, ks, kc = jax.random.split(key, 4)

    # Input.
    x = jax.random.uniform(kx, (B, IN), jnp.float32,
                           minval=grid_range[0], maxval=grid_range[1])

    # Knot grid buffer, same construction as the PyTorch module.
    h = (grid_range[1] - grid_range[0]) / grid_size
    grid1d = (jnp.arange(-spline_order, grid_size + spline_order + 1,
                         dtype=jnp.float32) * h + grid_range[0])
    grid = jnp.broadcast_to(grid1d, (IN, grid1d.shape[0]))            # (IN, 9)

    # Deterministic parameter init (shapes as in __init__).
    a_base = math.sqrt(5) * 0.5
    bound = math.sqrt(2.0 / (1.0 + a_base ** 2)) * math.sqrt(3.0 / IN)
    base_weight = jax.random.uniform(kb, (OUT, IN), jnp.float32,
                                     minval=-bound, maxval=bound)
    spline_weight = jax.random.uniform(
        ks, (OUT, IN, grid_size + spline_order), jnp.float32,
        minval=-0.1, maxval=0.1)
    spline_scaler = jax.random.uniform(kc, (OUT, IN), jnp.float32,
                                       minval=-bound, maxval=bound)

    # One-time parameter packing (scale + transpose + pad + lane-packed tables).
    tab, w_sp, w_b = pack_kan_params(
        grid, base_weight, spline_weight, spline_scaler,
        grid_size=grid_size, spline_order=spline_order)

    out = kan_linear_forward(x, tab, w_sp, w_b,
                             grid_size=grid_size, spline_order=spline_order,
                             out_features=OUT)
    out = jax.block_until_ready(out)

    ref = kan_linear_ref(x, grid, base_weight, spline_weight, spline_scaler,
                         grid_size, spline_order)
    # Spline bases go through bf16 (base branch stays f32) -> modest tolerance.
    np.testing.assert_allclose(np.asarray(out), np.asarray(ref),
                               rtol=1e-2, atol=1e-2)
    print("KERNEL_OK")
</pallas_src>

<mosaic_0001>
module attributes {stable_mosaic.version = 11 : i64} {
  func.func @kan_linear_kernel(%arg0: i32, %arg1: memref<128x32xf32, #tpu.memory_space<vmem>>, %arg2: memref<8x256xf32, #tpu.memory_space<vmem>>, %arg3: memref<256x128xbf16, #tpu.memory_space<vmem>>, %arg4: memref<32x128xf32, #tpu.memory_space<vmem>>, %arg5: memref<128x128xf32, #tpu.memory_space<vmem>>) attributes {dimension_semantics = [#tpu.dimension_semantics<parallel>], iteration_bounds = array<i64: 2>, scalar_prefetch = 0 : i64, scratch_operands = 0 : i64, tpu.core_type = #tpu.core_type<tc>, window_params = [{transform_indices = @transform_0, window_bounds = array<i64: 128, 32>}, {pipeline_mode = #tpu.pipeline_mode<synchronous>, transform_indices = @transform_1, window_bounds = array<i64: 8, 256>}, {pipeline_mode = #tpu.pipeline_mode<synchronous>, transform_indices = @transform_2, window_bounds = array<i64: 256, 128>}, {pipeline_mode = #tpu.pipeline_mode<synchronous>, transform_indices = @transform_3, window_bounds = array<i64: 32, 128>}, {transform_indices = @transform_4, window_bounds = array<i64: 128, 128>}]} {
    %c0 = arith.constant 0 : index
    %c0_0 = arith.constant 0 : index
    %0 = vector.load %arg1[%c0, %c0_0] : memref<128x32xf32, #tpu.memory_space<vmem>>, vector<128x32xf32>
    %1 = tpu.concatenate %0, %0, %0, %0, %0, %0, %0, %0 in 1 : vector<128x32xf32>, vector<128x32xf32>, vector<128x32xf32>, vector<128x32xf32>, vector<128x32xf32>, vector<128x32xf32>, vector<128x32xf32>, vector<128x32xf32> -> vector<128x256xf32>
    %c0_1 = arith.constant 0 : index
    %c0_2 = arith.constant 0 : index
    %2 = vector.load %arg2[%c0_1, %c0_2] : memref<8x256xf32, #tpu.memory_space<vmem>>, vector<1x256xf32>
    %c1 = arith.constant 1 : index
    %c0_3 = arith.constant 0 : index
    %3 = vector.load %arg2[%c1, %c0_3] : memref<8x256xf32, #tpu.memory_space<vmem>>, vector<1x256xf32>
    %4 = vector.broadcast %2 : vector<1x256xf32> to vector<128x256xf32>
    %5 = arith.cmpf oge, %1, %4 : vector<128x256xf32>
    %6 = vector.broadcast %3 : vector<1x256xf32> to vector<128x256xf32>
    %7 = arith.cmpf olt, %1, %6 : vector<128x256xf32>
    %8 = arith.andi %5, %7 : vector<128x256xi1>
    %9 = arith.extui %8 : vector<128x256xi1> to vector<128x256xi32>
    %10 = arith.sitofp %9 : vector<128x256xi32> to vector<128x256xf32>
    %11 = vector.broadcast %2 : vector<1x256xf32> to vector<128x256xf32>
    %12 = arith.subf %1, %11 : vector<128x256xf32>
    %c2 = arith.constant 2 : index
    %c0_4 = arith.constant 0 : index
    %13 = vector.load %arg2[%c2, %c0_4] : memref<8x256xf32, #tpu.memory_space<vmem>>, vector<1x256xf32>
    %c3 = arith.constant 3 : index
    %c0_5 = arith.constant 0 : index
    %14 = vector.load %arg2[%c3, %c0_5] : memref<8x256xf32, #tpu.memory_space<vmem>>, vector<1x256xf32>
    %c4 = arith.constant 4 : index
    %c0_6 = arith.constant 0 : index
    %15 = vector.load %arg2[%c4, %c0_6] : memref<8x256xf32, #tpu.memory_space<vmem>>, vector<1x256xf32>
    %c224_i32 = arith.constant 224 : i32
    %16 = tpu.dynamic_rotate %10 by %c224_i32 dim 1 : vector<128x256xf32>, i32 -> vector<128x256xf32>
    %17 = vector.broadcast %13 : vector<1x256xf32> to vector<128x256xf32>
    %18 = arith.mulf %12, %17 : vector<128x256xf32>
    %19 = arith.mulf %18, %10 : vector<128x256xf32>
    %20 = vector.broadcast %14 : vector<1x256xf32> to vector<128x256xf32>
    %21 = arith.subf %20, %1 : vector<128x256xf32>
    %22 = vector.broadcast %15 : vector<1x256xf32> to vector<128x256xf32>
    %23 = arith.mulf %21, %22 : vector<128x256xf32>
    %24 = arith.mulf %23, %16 : vector<128x256xf32>
    %25 = arith.addf %19, %24 : vector<128x256xf32>
    %c5 = arith.constant 5 : index
    %c0_7 = arith.constant 0 : index
    %26 = vector.load %arg2[%c5, %c0_7] : memref<8x256xf32, #tpu.memory_space<vmem>>, vector<1x256xf32>
    %c6 = arith.constant 6 : index
    %c0_8 = arith.constant 0 : index
    %27 = vector.load %arg2[%c6, %c0_8] : memref<8x256xf32, #tpu.memory_space<vmem>>, vector<1x256xf32>
    %c7 = arith.constant 7 : index
    %c0_9 = arith.constant 0 : index
    %28 = vector.load %arg2[%c7, %c0_9] : memref<8x256xf32, #tpu.memory_space<vmem>>, vector<1x256xf32>
    %c224_i32_10 = arith.constant 224 : i32
    %29 = tpu.dynamic_rotate %25 by %c224_i32_10 dim 1 : vector<128x256xf32>, i32 -> vector<128x256xf32>
    %30 = vector.broadcast %26 : vector<1x256xf32> to vector<128x256xf32>
    %31 = arith.mulf %12, %30 : vector<128x256xf32>
    %32 = arith.mulf %31, %25 : vector<128x256xf32>
    %33 = vector.broadcast %27 : vector<1x256xf32> to vector<128x256xf32>
    %34 = arith.subf %33, %1 : vector<128x256xf32>
    %35 = vector.broadcast %28 : vector<1x256xf32> to vector<128x256xf32>
    %36 = arith.mulf %34, %35 : vector<128x256xf32>
    %37 = arith.mulf %36, %29 : vector<128x256xf32>
    %38 = arith.addf %32, %37 : vector<128x256xf32>
    %cst = arith.constant 0.000000e+00 : f32
    %39 = vector.broadcast %cst : f32 to vector<128x32xf32>
    %40 = arith.cmpf oge, %0, %39 : vector<128x32xf32>
    %cst_11 = arith.constant 0.00999999977 : f32
    %41 = vector.broadcast %cst_11 : f32 to vector<128x32xf32>
    %42 = arith.mulf %41, %0 : vector<128x32xf32>
    %43 = arith.select %40, %0, %42 : vector<128x32xi1>, vector<128x32xf32>
    %44 = arith.truncf %38 : vector<128x256xf32> to vector<128x256xbf16>
    %c0_12 = arith.constant 0 : index
    %c0_13 = arith.constant 0 : index
    %45 = vector.load %arg3[%c0_12, %c0_13] : memref<256x128xbf16, #tpu.memory_space<vmem>>, vector<256x128xbf16>
    %cst_14 = arith.constant dense<0.000000e+00> : vector<128x128xf32>
    %46 = tpu.matmul %44, %45, %cst_14 {dimension_numbers = #tpu.dot_dimension_numbers<[1], [0], [0], [1], [0, 0, 1, 1], [], []>} : vector<128x256xbf16>, vector<256x128xbf16>, vector<128x128xf32> -> vector<128x128xf32>
    %c0_15 = arith.constant 0 : index
    %c0_16 = arith.constant 0 : index
    %47 = vector.load %arg4[%c0_15, %c0_16] : memref<32x128xf32, #tpu.memory_space<vmem>>, vector<32x128xf32>
    %cst_17 = arith.constant dense<0.000000e+00> : vector<128x128xf32>
    %48 = tpu.matmul %43, %47, %cst_17 {dimension_numbers = #tpu.dot_dimension_numbers<[1], [0], [0], [1], [0, 0, 1, 1], [], []>} : vector<128x32xf32>, vector<32x128xf32>, vector<128x128xf32> -> vector<128x128xf32>
    %49 = arith.addf %46, %48 : vector<128x128xf32>
    %c0_18 = arith.constant 0 : index
    %c0_19 = arith.constant 0 : index
    %50 = vector.load %arg5[%c0_18, %c0_19] : memref<128x128xf32, #tpu.memory_space<vmem>>, vector<128x128xf32>
    tpu.vector_store %arg5[%c0_18, %c0_19], %49 {strides = array<i32>} : memref<128x128xf32, #tpu.memory_space<vmem>>, vector<128x128xf32>,
    return
  }
  func.func @transform_0(%arg0: i32) -> (i32, i32) {
    %c0_i32 = arith.constant 0 : i32
    %c0_i32_0 = arith.constant 0 : i32
    return %arg0, %c0_i32 : i32, i32
  }
  func.func @transform_1(%arg0: i32) -> (i32, i32) {
    %c0_i32 = arith.constant 0 : i32
    %c0_i32_0 = arith.constant 0 : i32
    %c0_i32_1 = arith.constant 0 : i32
    return %c0_i32, %c0_i32_0 : i32, i32
  }
  func.func @transform_2(%arg0: i32) -> (i32, i32) {
    %c0_i32 = arith.constant 0 : i32
    %c0_i32_0 = arith.constant 0 : i32
    %c0_i32_1 = arith.constant 0 : i32
    return %c0_i32, %c0_i32_0 : i32, i32
  }
  func.func @transform_3(%arg0: i32) -> (i32, i32) {
    %c0_i32 = arith.constant 0 : i32
    %c0_i32_0 = arith.constant 0 : i32
    %c0_i32_1 = arith.constant 0 : i32
    return %c0_i32, %c0_i32_0 : i32, i32
  }
  func.func @transform_4(%arg0: i32) -> (i32, i32) {
    %c0_i32 = arith.constant 0 : i32
    %c0_i32_0 = arith.constant 0 : i32
    return %arg0, %c0_i32 : i32, i32
  }
}

</mosaic_0001>

<llo_original>
// kernel: tpu_custom_call.1
$region0: #{tpu_custom_call.1}
  #allocation0 [shape = 'u32[]', space=smem, size = 0x4, offset = 0x4, fixed_abs, tag = 'smem constant byte address 0x4 - core index']
  #allocation1 [shape = 'u32[144,128]{1,0:T(1,128)}', space=vmem, size = 0x12000, scoped, tag = 'internal scratch']
  %s0 = inlined_call_operand.vmem [shape: f32[256,32], index: 0, kind: input, shape index: {}]
  %s1 = inlined_call_operand.vmem [shape: f32[8,256], index: 1, kind: input, shape index: {}]
  %s2 = inlined_call_operand.vmem [shape: bf16[256,128], index: 2, kind: input, shape index: {}]
  %s3 = inlined_call_operand.vmem [shape: f32[32,128], index: 3, kind: input, shape index: {}]
  %s4 = inlined_call_operand.hbm [shape: f32[256,128], index: 4, kind: output, shape index: {}]
  %s5 = sld [smem:[#allocation0]]
  $region49: #{tpu_custom_call.1} parent=0
    _
  %s7 = ssub.s32 1, %s5
  %s8 = scalar_select 0, %s7, %s5
  $region1: #{tpu_custom_call.1} parent=0
    #allocation2 [shape = 'u8[131072]{0}', space=vmem, size = 0x20000, scoped, tag = 'output window, operand 0']
    #allocation3 [shape = 's32[2]{0}', space=sflag, size = 0x8, scoped, tag = 'scoped memory for tpu_custom_call.1']
    %9 = vsyncpa [#allocation3], 0
    %s10 = scalar_lea.sflag [#allocation3], 1
    %11 = vsyncpa %s10, 0
    loop: start=0, step=1, limit=4
    $region2: #{tpu_custom_call.1} parent=1 // loop_pre_header
      _
    $region3: #{tpu_custom_call.1} parent=1 // loop_header
      %s13 = sphi 0, %s17
      %p14 = scmp.ge.s32.totalorder %s13, 4
      %s23 = sphi 0, %s25
      %s26 = sphi 0, %s23
      %s27 = sphi 0, %s26
      %s43 = sphi 0, %s27
      %s47 = sphi 0, %s47
      %s49 = sphi 0, %s47
      %s50 = sphi 0, %s49
      %s64 = sphi 0, %s50
      %s68 = sphi 0, %s68
      %s70 = sphi 0, %s68
      %s71 = sphi 0, %s70
      %s85 = sphi 0, %s71
      %s89 = sphi 0, %s89
      %s91 = sphi 0, %s89
      %s92 = sphi 0, %s91
      %s106 = sphi 0, %s92
      %s112 = sphi 0, %s114
      %s115 = sphi 0, %s112
      %s116 = sphi 0, %s115
      %s132 = sphi 0, %s116
    $region4: #{tpu_custom_call.1} parent=1 // loop_header_branch
      %16 = sbr.rel (%p14) target = $region8
    $region5: #{tpu_custom_call.1} parent=1 // loop_body
      %s18 = ssub.s32 %s13, 1
      %s19 = ssub.s32 %s13, 2
      %s20 = sadd.s32 %s13, 1
      %s21 = ssub.s32 %s13, %s20
      %p22 = scmp.eq.s32.totalorder %s21, 0
      %s24 = sadd.s32 %s23, 1
      %s25 = scalar_select %p22, %s23, %s24
      %p28 = pneg %p22
      %p29 = scmp.eq.s32.totalorder %s13, 1
      %p30 = por %p28, %p29
      %p31 = scmp.ne.s32.totalorder %s23, %s26
      %p32 = scmp.eq.s32.totalorder %s13, 0
      %p33 = por %p31, %p32
      %p34 = scmp.ne.s32.totalorder %s23, %s26
      %p35 = scmp.eq.s32.totalorder %s18, 1
      %p36 = por %p34, %p35
      %p37 = scmp.ne.s32.totalorder %s26, %s27
      %p38 = scmp.eq.s32.totalorder %s18, 0
      %p39 = por %p37, %p38
      %p40 = scmp.ne.s32.totalorder %s26, %s27
      %p41 = scmp.eq.s32.totalorder %s19, 1
      %p42 = por %p40, %p41
      %p44 = scmp.ne.s32.totalorder %s27, %s43
      %p45 = scmp.eq.s32.totalorder %s19, 0
      %p46 = por %p44, %p45
      %s48 = sadd.s32 %s47, 1
      %p51 = scmp.eq.s32.totalorder %s13, 1
      %p52 = scmp.ne.s32.totalorder %s47, %s49
      %p53 = scmp.eq.s32.totalorder %s13, 0
      %p54 = por %p52, %p53
      %p55 = scmp.ne.s32.totalorder %s47, %s49
      %p56 = scmp.eq.s32.totalorder %s18, 1
      %p57 = por %p55, %p56
      %p58 = scmp.ne.s32.totalorder %s49, %s50
      %p59 = scmp.eq.s32.totalorder %s18, 0
      %p60 = por %p58, %p59
      %p61 = scmp.ne.s32.totalorder %s49, %s50
      %p62 = scmp.eq.s32.totalorder %s19, 1
      %p63 = por %p61, %p62
      %p65 = scmp.ne.s32.totalorder %s50, %s64
      %p66 = scmp.eq.s32.totalorder %s19, 0
      %p67 = por %p65, %p66
      %s69 = sadd.s32 %s68, 1
      %p72 = scmp.eq.s32.totalorder %s13, 1
      %p73 = scmp.ne.s32.totalorder %s68, %s70
      %p74 = scmp.eq.s32.totalorder %s13, 0
      %p75 = por %p73, %p74
      %p76 = scmp.ne.s32.totalorder %s68, %s70
      %p77 = scmp.eq.s32.totalorder %s18, 1
      %p78 = por %p76, %p77
      %p79 = scmp.ne.s32.totalorder %s70, %s71
      %p80 = scmp.eq.s32.totalorder %s18, 0
      %p81 = por %p79, %p80
      %p82 = scmp.ne.s32.totalorder %s70, %s71
      %p83 = scmp.eq.s32.totalorder %s19, 1
      %p84 = por %p82, %p83
      %p86 = scmp.ne.s32.totalorder %s71, %s85
      %p87 = scmp.eq.s32.totalorder %s19, 0
      %p88 = por %p86, %p87
      %s90 = sadd.s32 %s89, 1
      %p93 = scmp.eq.s32.totalorder %s13, 1
      %p94 = scmp.ne.s32.totalorder %s89, %s91
      %p95 = scmp.eq.s32.totalorder %s13, 0
      %p96 = por %p94, %p95
      %p97 = scmp.ne.s32.totalorder %s89, %s91
      %p98 = scmp.eq.s32.totalorder %s18, 1
      %p99 = por %p97, %p98
      %p100 = scmp.ne.s32.totalorder %s91, %s92
      %p101 = scmp.eq.s32.totalorder %s18, 0
      %p102 = por %p100, %p101
      %p103 = scmp.ne.s32.totalorder %s91, %s92
      %p104 = scmp.eq.s32.totalorder %s19, 1
      %p105 = por %p103, %p104
      %p107 = scmp.ne.s32.totalorder %s92, %s106
      %p108 = scmp.eq.s32.totalorder %s19, 0
      %p109 = por %p107, %p108
      %s110 = ssub.s32 %s13, %s20
      %p111 = scmp.eq.s32.totalorder %s110, 0
      %s113 = sadd.s32 %s112, 1
      %s114 = scalar_select %p111, %s112, %s113
      %p117 = pneg %p111
      %p118 = scmp.eq.s32.totalorder %s13, 1
      %p119 = por %p117, %p118
      %p120 = scmp.ne.s32.totalorder %s112, %s115
      %p121 = scmp.eq.s32.totalorder %s13, 0
      %p122 = por %p120, %p121
      %p123 = scmp.ne.s32.totalorder %s112, %s115
      %p124 = scmp.eq.s32.totalorder %s18, 1
      %p125 = por %p123, %p124
      %p126 = scmp.ne.s32.totalorder %s115, %s116
      %p127 = scmp.eq.s32.totalorder %s18, 0
      %p128 = por %p126, %p127
      %p129 = scmp.ne.s32.totalorder %s115, %s116
      %p130 = scmp.eq.s32.totalorder %s19, 1
      %p131 = por %p129, %p130
      %p133 = scmp.ne.s32.totalorder %s116, %s132
      %p134 = scmp.eq.s32.totalorder %s19, 0
      %p135 = por %p133, %p134
      %p136 = scmp.le.s32.totalorder 1, %s13
      %p137 = scmp.lt.s32.totalorder %s13, 3
      %p138 = pnand %p136, %p137
      %p139 = pneg %p138
      // Predicated region
      $region9: #{tpu_custom_call.1} parent=5 // pred_check
        _
      $region10: #{tpu_custom_call.1} parent=5 // pred_check_branch
        %141 = sbr.rel (%p138) target = $region12
      $region11: #{tpu_custom_call.1} parent=5 // pred_region
        %s142 = ssub.s32 %s13, 1
        // Predicated region
        $region13: #{tpu_custom_call.1} parent=11 // pred_check
          %p143 = pneg %p60
        $region14: #{tpu_custom_call.1} parent=11 // pred_check_branch
          %145 = sbr.rel (%p143) target = $region16
        $region15: #{tpu_custom_call.1} parent=11 // pred_region
          _
        $region16: #{tpu_custom_call.1} parent=11 // pred_fallthru
          _
        // Predicated region
        $region17: #{tpu_custom_call.1} parent=11 // pred_check
          %p146 = pneg %p81
        $region18: #{tpu_custom_call.1} parent=11 // pred_check_branch
          %148 = sbr.rel (%p146) target = $region20
        $region19: #{tpu_custom_call.1} parent=11 // pred_region
          _
        $region20: #{tpu_custom_call.1} parent=11 // pred_fallthru
          _
        // Predicated region
        $region21: #{tpu_custom_call.1} parent=11 // pred_check
          %p149 = pneg %p102
        $region22: #{tpu_custom_call.1} parent=11 // pred_check_branch
          %151 = sbr.rel (%p149) target = $region24
        $region23: #{tpu_custom_call.1} parent=11 // pred_region
          _
        $region24: #{tpu_custom_call.1} parent=11 // pred_fallthru
          _
      $region12: #{tpu_custom_call.1} parent=5 // pred_fallthru
        _
      %p152 = scmp.lt.s32.totalorder %s13, 2
      // Predicated region
      $region25: #{tpu_custom_call.1} parent=5 // pred_check
        %p153 = pneg %p152
      $region26: #{tpu_custom_call.1} parent=5 // pred_check_branch
        %155 = sbr.rel (%p153) target = $region28
      $region27: #{tpu_custom_call.1} parent=5 // pred_region
        // Predicated region
        $region29: #{tpu_custom_call.1} parent=27 // pred_check
          %p156 = pneg %p33
        $region30: #{tpu_custom_call.1} parent=27 // pred_check_branch
          %158 = sbr.rel (%p156) target = $region32
        $region31: #{tpu_custom_call.1} parent=27 // pred_region
          %s159 = smul.u32 16, %s13
          %p160 = scmp.lt.s32.totalorder %s159, 31
          %s161 = scalar_select %p160, %s159, 31
          %s162 = smul.addr %s161, 8
          %s163 = scalar_lea.vmem %s0, %s162
          %s164 = smul.u32 16, %s13
        $region32: #{tpu_custom_call.1} parent=27 // pred_fallthru
          _
      $region28: #{tpu_custom_call.1} parent=5 // pred_fallthru
        _
      %p165 = scmp.le.s32.totalorder 1, %s13
      %p166 = scmp.lt.s32.totalorder %s13, 3
      %p167 = pnand %p165, %p166
      %p168 = pneg %p167
      // Predicated region
      $region33: #{tpu_custom_call.1} parent=5 // pred_check
        _
      $region34: #{tpu_custom_call.1} parent=5 // pred_check_branch
        %170 = sbr.rel (%p167) target = $region36
      $region35: #{tpu_custom_call.1} parent=5 // pred_region
        %s171 = ssub.s32 %s13, 1
        %s172 = smul.u32 16, %s18
        %p173 = scmp.lt.s32.totalorder %s172, 31
        %s174 = scalar_select %p173, %s172, 31
        %s175 = smul.addr %s174, 8
        %s176 = scalar_lea.vmem %s0, %s175
        %p177 = pneg %p39
        %p178 = pneg %p36
        %p179 = pneg %p60
        %p180 = pneg %p57
        %p181 = pneg %p81
        %p182 = pneg %p78
        %p183 = pneg %p102
        %p184 = pneg %p99
        %p185 = pneg %p128
        %p186 = pneg %p125
        %s187 = sand.u32 %s115, 1
        %s188 = scalar_lea.sflag [#allocation3], %s187
        %s189 = sand.u32 %s115, 1
        %s190 = smul.addr %s189, 128
        %s191 = scalar_lea.vmem [#allocation2], %s190
        %s192 = smul.u32 16, %s18
        %p193 = scmp.lt.s32.totalorder %s192, 31
        %s194 = scalar_select %p193, %s192, 31
        %s195 = smul.addr %s194, 8
        %s196 = scalar_lea.vmem %s0, %s195
        %s197 = smul.u32 16, %s18
        %s198 = smul.u32 16, %s18
        %v200 = vld [vmem:[%s196] sm:$0xff]
        %v201 = vld [vmem:[%s196 + $0x8] sm:$0xff]
        %v202 = vld [vmem:[%s196 + $0x10] sm:$0xff]
        %v203 = vld [vmem:[%s196 + $0x18] sm:$0xff]
        %v204 = vld [vmem:[%s196 + $0x20] sm:$0xff]
        %v205 = vld [vmem:[%s196 + $0x28] sm:$0xff]
        %v206 = vld [vmem:[%s196 + $0x30] sm:$0xff]
        %v207 = vld [vmem:[%s196 + $0x38] sm:$0xff]
        %v208 = vld [vmem:[%s196 + $0x40] sm:$0xff]
        %v209 = vld [vmem:[%s196 + $0x48] sm:$0xff]
        %v210 = vld [vmem:[%s196 + $0x50] sm:$0xff]
        %v211 = vld [vmem:[%s196 + $0x58] sm:$0xff]
        %v212 = vld [vmem:[%s196 + $0x60] sm:$0xff]
        %v213 = vld [vmem:[%s196 + $0x68] sm:$0xff]
        %v214 = vld [vmem:[%s196 + $0x70] sm:$0xff]
        %v215 = vld [vmem:[%s196 + $0x78] sm:$0xff]
        %232 = vrot.lane.b32.xlu0 %v200, 32
        %v233 = vpop.permute.xlu0 %232
        %234 = vrot.lane.b32.xlu0 %v201, 32
        %v235 = vpop.permute.xlu0 %234
        %236 = vrot.lane.b32.xlu0 %v202, 32
        %v237 = vpop.permute.xlu0 %236
        %238 = vrot.lane.b32.xlu0 %v203, 32
        %v239 = vpop.permute.xlu0 %238
        %240 = vrot.lane.b32.xlu0 %v204, 32
        %v241 = vpop.permute.xlu0 %240
        %242 = vrot.lane.b32.xlu0 %v205, 32
        %v243 = vpop.permute.xlu0 %242
        %244 = vrot.lane.b32.xlu0 %v206, 32
        %v245 = vpop.permute.xlu0 %244
        %246 = vrot.lane.b32.xlu0 %v207, 32
        %v247 = vpop.permute.xlu0 %246
        %248 = vrot.lane.b32.xlu0 %v208, 32
        %v249 = vpop.permute.xlu0 %248
        %250 = vrot.lane.b32.xlu0 %v209, 32
        %v251 = vpop.permute.xlu0 %250
        %252 = vrot.lane.b32.xlu0 %v210, 32
        %v253 = vpop.permute.xlu0 %252
        %254 = vrot.lane.b32.xlu0 %v211, 32
        %v255 = vpop.permute.xlu0 %254
        %256 = vrot.lane.b32.xlu0 %v212, 32
        %v257 = vpop.permute.xlu0 %256
        %258 = vrot.lane.b32.xlu0 %v213, 32
        %v259 = vpop.permute.xlu0 %258
        %260 = vrot.lane.b32.xlu0 %v214, 32
        %v261 = vpop.permute.xlu0 %260
        %262 = vrot.lane.b32.xlu0 %v215, 32
        %v263 = vpop.permute.xlu0 %262
        %280 = vrot.lane.b32.xlu0 %v200, 64
        %v281 = vpop.permute.xlu0 %280
        %282 = vrot.lane.b32.xlu0 %v201, 64
        %v283 = vpop.permute.xlu0 %282
        %284 = vrot.lane.b32.xlu0 %v202, 64
        %v285 = vpop.permute.xlu0 %284
        %286 = vrot.lane.b32.xlu0 %v203, 64
        %v287 = vpop.permute.xlu0 %286
        %288 = vrot.lane.b32.xlu0 %v204, 64
        %v289 = vpop.permute.xlu0 %288
        %290 = vrot.lane.b32.xlu0 %v205, 64
        %v291 = vpop.permute.xlu0 %290
        %292 = vrot.lane.b32.xlu0 %v206, 64
        %v293 = vpop.permute.xlu0 %292
        %294 = vrot.lane.b32.xlu0 %v207, 64
        %v295 = vpop.permute.xlu0 %294
        %296 = vrot.lane.b32.xlu0 %v208, 64
        %v297 = vpop.permute.xlu0 %296
        %298 = vrot.lane.b32.xlu0 %v209, 64
        %v299 = vpop.permute.xlu0 %298
        %300 = vrot.lane.b32.xlu0 %v210, 64
        %v301 = vpop.permute.xlu0 %300
        %302 = vrot.lane.b32.xlu0 %v211, 64
        %v303 = vpop.permute.xlu0 %302
        %304 = vrot.lane.b32.xlu0 %v212, 64
        %v305 = vpop.permute.xlu0 %304
        %306 = vrot.lane.b32.xlu0 %v213, 64
        %v307 = vpop.permute.xlu0 %306
        %308 = vrot.lane.b32.xlu0 %v214, 64
        %v309 = vpop.permute.xlu0 %308
        %310 = vrot.lane.b32.xlu0 %v215, 64
        %v311 = vpop.permute.xlu0 %310
        %328 = vrot.lane.b32.xlu0 %v200, 96
        %v329 = vpop.permute.xlu0 %328
        %330 = vrot.lane.b32.xlu0 %v201, 96
        %v331 = vpop.permute.xlu0 %330
        %332 = vrot.lane.b32.xlu0 %v202, 96
        %v333 = vpop.permute.xlu0 %332
        %334 = vrot.lane.b32.xlu0 %v203, 96
        %v335 = vpop.permute.xlu0 %334
        %336 = vrot.lane.b32.xlu0 %v204, 96
        %v337 = vpop.permute.xlu0 %336
        %338 = vrot.lane.b32.xlu0 %v205, 96
        %v339 = vpop.permute.xlu0 %338
        %340 = vrot.lane.b32.xlu0 %v206, 96
        %v341 = vpop.permute.xlu0 %340
        %342 = vrot.lane.b32.xlu0 %v207, 96
        %v343 = vpop.permute.xlu0 %342
        %344 = vrot.lane.b32.xlu0 %v208, 96
        %v345 = vpop.permute.xlu0 %344
        %346 = vrot.lane.b32.xlu0 %v209, 96
        %v347 = vpop.permute.xlu0 %346
        %348 = vrot.lane.b32.xlu0 %v210, 96
        %v349 = vpop.permute.xlu0 %348
        %350 = vrot.lane.b32.xlu0 %v211, 96
        %v351 = vpop.permute.xlu0 %350
        %352 = vrot.lane.b32.xlu0 %v212, 96
        %v353 = vpop.permute.xlu0 %352
        %354 = vrot.lane.b32.xlu0 %v213, 96
        %v355 = vpop.permute.xlu0 %354
        %356 = vrot.lane.b32.xlu0 %v214, 96
        %v357 = vpop.permute.xlu0 %356
        %358 = vrot.lane.b32.xlu0 %v215, 96
        %v359 = vpop.permute.xlu0 %358
        %vm376 = vcmask 261120
        %v377 = vsel %vm376, %v200, %v233
        %v378 = vsel %vm376, %v201, %v235
        %v379 = vsel %vm376, %v202, %v237
        %v380 = vsel %vm376, %v203, %v239
        %v381 = vsel %vm376, %v204, %v241
        %v382 = vsel %vm376, %v205, %v243
        %v383 = vsel %vm376, %v206, %v245
        %v384 = vsel %vm376, %v207, %v247
        %v385 = vsel %vm376, %v208, %v249
        %v386 = vsel %vm376, %v209, %v251
        %v387 = vsel %vm376, %v210, %v253
        %v388 = vsel %vm376, %v211, %v255
        %v389 = vsel %vm376, %v212, %v257
        %v390 = vsel %vm376, %v213, %v259
        %v391 = vsel %vm376, %v214, %v261
        %v392 = vsel %vm376, %v215, %v263
        %vm393 = vcmask 523264
        %v394 = vsel %vm393, %v377, %v281
        %v395 = vsel %vm393, %v378, %v283
        %v396 = vsel %vm393, %v379, %v285
        %v397 = vsel %vm393, %v380, %v287
        %v398 = vsel %vm393, %v381, %v289
        %v399 = vsel %vm393, %v382, %v291
        %v400 = vsel %vm393, %v383, %v293
        %v401 = vsel %vm393, %v384, %v295
        %v402 = vsel %vm393, %v385, %v297
        %v403 = vsel %vm393, %v386, %v299
        %v404 = vsel %vm393, %v387, %v301
        %v405 = vsel %vm393, %v388, %v303
        %v406 = vsel %vm393, %v389, %v305
        %v407 = vsel %vm393, %v390, %v307
        %v408 = vsel %vm393, %v391, %v309
        %v409 = vsel %vm393, %v392, %v311
        %vm410 = vcmask 785408
        %v411 = vsel %vm410, %v394, %v329
        %v412 = vsel %vm410, %v395, %v331
        %v413 = vsel %vm410, %v396, %v333
        %v414 = vsel %vm410, %v397, %v335
        %v415 = vsel %vm410, %v398, %v337
        %v416 = vsel %vm410, %v399, %v339
        %v417 = vsel %vm410, %v400, %v341
        %v418 = vsel %vm410, %v401, %v343
        %v419 = vsel %vm410, %v402, %v345
        %v420 = vsel %vm410, %v403, %v347
        %v421 = vsel %vm410, %v404, %v349
        %v422 = vsel %vm410, %v405, %v351
        %v423 = vsel %vm410, %v406, %v353
        %v424 = vsel %vm410, %v407, %v355
        %v425 = vsel %vm410, %v408, %v357
        %v426 = vsel %vm410, %v409, %v359
        %v427 = vld [vmem:[%s1] ss:$8 sm:$0x3]
        %s428 = scalar_lea.vmem %s1, 1
        %v429 = vld [vmem:[%s428] ss:$8 sm:$0x3]
        %v431 = vlaneseq
        %v432 = vshrl.u32 %v431, 7
        %v433 = vsub.s32 0, %v432
        %v434 = vrot.slane %v427, %v433
        %v435 = vlaneseq
        %v436 = vshrl.u32 %v435, 7
        %v437 = vsub.s32 1, %v436
        %v438 = vrot.slane %v427, %v437
        %vm441 = vcmp.ge.f32.partialorder %v411, %v434
        %vm442 = vcmp.ge.f32.partialorder %v411, %v438
        %vm443 = vcmp.ge.f32.partialorder %v412, %v434
        %vm444 = vcmp.ge.f32.partialorder %v412, %v438
        %vm445 = vcmp.ge.f32.partialorder %v413, %v434
        %vm446 = vcmp.ge.f32.partialorder %v413, %v438
        %vm447 = vcmp.ge.f32.partialorder %v414, %v434
        %vm448 = vcmp.ge.f32.partialorder %v414, %v438
        %vm449 = vcmp.ge.f32.partialorder %v415, %v434
        %vm450 = vcmp.ge.f32.partialorder %v415, %v438
        %vm451 = vcmp.ge.f32.partialorder %v416, %v434
        %vm452 = vcmp.ge.f32.partialorder %v416, %v438
        %vm453 = vcmp.ge.f32.partialorder %v417, %v434
        %vm454 = vcmp.ge.f32.partialorder %v417, %v438
        %vm455 = vcmp.ge.f32.partialorder %v418, %v434
        %vm456 = vcmp.ge.f32.partialorder %v418, %v438
        %vm457 = vcmp.ge.f32.partialorder %v419, %v434
        %vm458 = vcmp.ge.f32.partialorder %v419, %v438
        %vm459 = vcmp.ge.f32.partialorder %v420, %v434
        %vm460 = vcmp.ge.f32.partialorder %v420, %v438
        %vm461 = vcmp.ge.f32.partialorder %v421, %v434
        %vm462 = vcmp.ge.f32.partialorder %v421, %v438
        %vm463 = vcmp.ge.f32.partialorder %v422, %v434
        %vm464 = vcmp.ge.f32.partialorder %v422, %v438
        %vm465 = vcmp.ge.f32.partialorder %v423, %v434
        %vm466 = vcmp.ge.f32.partialorder %v423, %v438
        %vm467 = vcmp.ge.f32.partialorder %v424, %v434
        %vm468 = vcmp.ge.f32.partialorder %v424, %v438
        %vm469 = vcmp.ge.f32.partialorder %v425, %v434
        %vm470 = vcmp.ge.f32.partialorder %v425, %v438
        %vm471 = vcmp.ge.f32.partialorder %v426, %v434
        %vm472 = vcmp.ge.f32.partialorder %v426, %v438
        %v474 = vlaneseq
        %v475 = vshrl.u32 %v474, 7
        %v476 = vsub.s32 0, %v475
        %v477 = vrot.slane %v429, %v476
        %v478 = vlaneseq
        %v479 = vshrl.u32 %v478, 7
        %v480 = vsub.s32 1, %v479
        %v481 = vrot.slane %v429, %v480
        %vm484 = vcmp.lt.f32.partialorder %v411, %v477
        %vm485 = vcmp.lt.f32.partialorder %v411, %v481
        %vm486 = vcmp.lt.f32.partialorder %v412, %v477
        %vm487 = vcmp.lt.f32.partialorder %v412, %v481
        %vm488 = vcmp.lt.f32.partialorder %v413, %v477
        %vm489 = vcmp.lt.f32.partialorder %v413, %v481
        %vm490 = vcmp.lt.f32.partialorder %v414, %v477
        %vm491 = vcmp.lt.f32.partialorder %v414, %v481
        %vm492 = vcmp.lt.f32.partialorder %v415, %v477
        %vm493 = vcmp.lt.f32.partialorder %v415, %v481
        %vm494 = vcmp.lt.f32.partialorder %v416, %v477
        %vm495 = vcmp.lt.f32.partialorder %v416, %v481
        %vm496 = vcmp.lt.f32.partialorder %v417, %v477
        %vm497 = vcmp.lt.f32.partialorder %v417, %v481
        %vm498 = vcmp.lt.f32.partialorder %v418, %v477
        %vm499 = vcmp.lt.f32.partialorder %v418, %v481
        %vm500 = vcmp.lt.f32.partialorder %v419, %v477
        %vm501 = vcmp.lt.f32.partialorder %v419, %v481
        %vm502 = vcmp.lt.f32.partialorder %v420, %v477
        %vm503 = vcmp.lt.f32.partialorder %v420, %v481
        %vm504 = vcmp.lt.f32.partialorder %v421, %v477
        %vm505 = vcmp.lt.f32.partialorder %v421, %v481
        %vm506 = vcmp.lt.f32.partialorder %v422, %v477
        %vm507 = vcmp.lt.f32.partialorder %v422, %v481
        %vm508 = vcmp.lt.f32.partialorder %v423, %v477
        %vm509 = vcmp.lt.f32.partialorder %v423, %v481
        %vm510 = vcmp.lt.f32.partialorder %v424, %v477
        %vm511 = vcmp.lt.f32.partialorder %v424, %v481
        %vm512 = vcmp.lt.f32.partialorder %v425, %v477
        %vm513 = vcmp.lt.f32.partialorder %v425, %v481
        %vm514 = vcmp.lt.f32.partialorder %v426, %v477
        %vm515 = vcmp.lt.f32.partialorder %v426, %v481
        %vm516 = vmand %vm441, %vm484
        %vm517 = vmand %vm442, %vm485
        %vm518 = vmand %vm443, %vm486
        %vm519 = vmand %vm444, %vm487
        %vm520 = vmand %vm445, %vm488
        %vm521 = vmand %vm446, %vm489
        %vm522 = vmand %vm447, %vm490
        %vm523 = vmand %vm448, %vm491
        %vm524 = vmand %vm449, %vm492
        %vm525 = vmand %vm450, %vm493
        %vm526 = vmand %vm451, %vm494
        %vm527 = vmand %vm452, %vm495
        %vm528 = vmand %vm453, %vm496
        %vm529 = vmand %vm454, %vm497
        %vm530 = vmand %vm455, %vm498
        %vm531 = vmand %vm456, %vm499
        %vm532 = vmand %vm457, %vm500
        %vm533 = vmand %vm458, %vm501
        %vm534 = vmand %vm459, %vm502
        %vm535 = vmand %vm460, %vm503
        %vm536 = vmand %vm461, %vm504
        %vm537 = vmand %vm462, %vm505
        %vm538 = vmand %vm463, %vm506
        %vm539 = vmand %vm464, %vm507
        %vm540 = vmand %vm465, %vm508
        %vm541 = vmand %vm466, %vm509
        %vm542 = vmand %vm467, %vm510
        %vm543 = vmand %vm468, %vm511
        %vm544 = vmand %vm469, %vm512
        %vm545 = vmand %vm470, %vm513
        %vm546 = vmand %vm471, %vm514
        %vm547 = vmand %vm472, %vm515
        %v548 = vsel %vm516, 1, 0
        %v549 = vsel %vm517, 1, 0
        %v550 = vsel %vm518, 1, 0
        %v551 = vsel %vm519, 1, 0
        %v552 = vsel %vm520, 1, 0
        %v553 = vsel %vm521, 1, 0
        %v554 = vsel %vm522, 1, 0
        %v555 = vsel %vm523, 1, 0
        %v556 = vsel %vm524, 1, 0
        %v557 = vsel %vm525, 1, 0
        %v558 = vsel %vm526, 1, 0
        %v559 = vsel %vm527, 1, 0
        %v560 = vsel %vm528, 1, 0
        %v561 = vsel %vm529, 1, 0
        %v562 = vsel %vm530, 1, 0
        %v563 = vsel %vm531, 1, 0
        %v564 = vsel %vm532, 1, 0
        %v565 = vsel %vm533, 1, 0
        %v566 = vsel %vm534, 1, 0
        %v567 = vsel %vm535, 1, 0
        %v568 = vsel %vm536, 1, 0
        %v569 = vsel %vm537, 1, 0
        %v570 = vsel %vm538, 1, 0
        %v571 = vsel %vm539, 1, 0
        %v572 = vsel %vm540, 1, 0
        %v573 = vsel %vm541, 1, 0
        %v574 = vsel %vm542, 1, 0
        %v575 = vsel %vm543, 1, 0
        %v576 = vsel %vm544, 1, 0
        %v577 = vsel %vm545, 1, 0
        %v578 = vsel %vm546, 1, 0
        %v579 = vsel %vm547, 1, 0
        %v580 = vcvt.s32.f32 %v548
        %v581 = vcvt.s32.f32 %v549
        %v582 = vcvt.s32.f32 %v550
        %v583 = vcvt.s32.f32 %v551
        %v584 = vcvt.s32.f32 %v552
        %v585 = vcvt.s32.f32 %v553
        %v586 = vcvt.s32.f32 %v554
        %v587 = vcvt.s32.f32 %v555
        %v588 = vcvt.s32.f32 %v556
        %v589 = vcvt.s32.f32 %v557
        %v590 = vcvt.s32.f32 %v558
        %v591 = vcvt.s32.f32 %v559
        %v592 = vcvt.s32.f32 %v560
        %v593 = vcvt.s32.f32 %v561
        %v594 = vcvt.s32.f32 %v562
        %v595 = vcvt.s32.f32 %v563
        %v596 = vcvt.s32.f32 %v564
        %v597 = vcvt.s32.f32 %v565
        %v598 = vcvt.s32.f32 %v566
        %v599 = vcvt.s32.f32 %v567
        %v600 = vcvt.s32.f32 %v568
        %v601 = vcvt.s32.f32 %v569
        %v602 = vcvt.s32.f32 %v570
        %v603 = vcvt.s32.f32 %v571
        %v604 = vcvt.s32.f32 %v572
        %v605 = vcvt.s32.f32 %v573
        %v606 = vcvt.s32.f32 %v574
        %v607 = vcvt.s32.f32 %v575
        %v608 = vcvt.s32.f32 %v576
        %v609 = vcvt.s32.f32 %v577
        %v610 = vcvt.s32.f32 %v578
        %v611 = vcvt.s32.f32 %v579
        %v612 = vsub.f32 %v411, %v434
        %v613 = vsub.f32 %v411, %v438
        %v614 = vsub.f32 %v412, %v434
        %v615 = vsub.f32 %v412, %v438
        %v616 = vsub.f32 %v413, %v434
        %v617 = vsub.f32 %v413, %v438
        %v618 = vsub.f32 %v414, %v434
        %v619 = vsub.f32 %v414, %v438
        %v620 = vsub.f32 %v415, %v434
        %v621 = vsub.f32 %v415, %v438
        %v622 = vsub.f32 %v416, %v434
        %v623 = vsub.f32 %v416, %v438
        %v624 = vsub.f32 %v417, %v434
        %v625 = vsub.f32 %v417, %v438
        %v626 = vsub.f32 %v418, %v434
        %v627 = vsub.f32 %v418, %v438
        %v628 = vsub.f32 %v419, %v434
        %v629 = vsub.f32 %v419, %v438
        %v630 = vsub.f32 %v420, %v434
        %v631 = vsub.f32 %v420, %v438
        %v632 = vsub.f32 %v421, %v434
        %v633 = vsub.f32 %v421, %v438
        %v634 = vsub.f32 %v422, %v434
        %v635 = vsub.f32 %v422, %v438
        %v636 = vsub.f32 %v423, %v434
        %v637 = vsub.f32 %v423, %v438
        %v638 = vsub.f32 %v424, %v434
        %v639 = vsub.f32 %v424, %v438
        %v640 = vsub.f32 %v425, %v434
        %v641 = vsub.f32 %v425, %v438
        %v642 = vsub.f32 %v426, %v434
        %v643 = vsub.f32 %v426, %v438
        %s644 = scalar_lea.vmem %s1, 2
        %v645 = vld [vmem:[%s644] ss:$8 sm:$0x3]
        %s646 = scalar_lea.vmem %s1, 3
        %v647 = vld [vmem:[%s646] ss:$8 sm:$0x3]
        %s648 = scalar_lea.vmem %s1, 4
        %v649 = vld [vmem:[%s648] ss:$8 sm:$0x3]
        %650 = vrot.lane.b32.xlu0 %v580, 96
        %v651 = vpop.permute.xlu0 %650
        %652 = vrot.lane.b32.xlu0 %v582, 96
        %v653 = vpop.permute.xlu0 %652
        %654 = vrot.lane.b32.xlu0 %v584, 96
        %v655 = vpop.permute.xlu0 %654
        %656 = vrot.lane.b32.xlu0 %v586, 96
        %v657 = vpop.permute.xlu0 %656
        %658 = vrot.lane.b32.xlu0 %v588, 96
        %v659 = vpop.permute.xlu0 %658
        %660 = vrot.lane.b32.xlu0 %v590, 96
        %v661 = vpop.permute.xlu0 %660
        %662 = vrot.lane.b32.xlu0 %v592, 96
        %v663 = vpop.permute.xlu0 %662
        %664 = vrot.lane.b32.xlu0 %v594, 96
        %v665 = vpop.permute.xlu0 %664
        %666 = vrot.lane.b32.xlu0 %v596, 96
        %v667 = vpop.permute.xlu0 %666
        %668 = vrot.lane.b32.xlu0 %v598, 96
        %v669 = vpop.permute.xlu0 %668
        %670 = vrot.lane.b32.xlu0 %v600, 96
        %v671 = vpop.permute.xlu0 %670
        %672 = vrot.lane.b32.xlu0 %v602, 96
        %v673 = vpop.permute.xlu0 %672
        %674 = vrot.lane.b32.xlu0 %v604, 96
        %v675 = vpop.permute.xlu0 %674
        %676 = vrot.lane.b32.xlu0 %v606, 96
        %v677 = vpop.permute.xlu0 %676
        %678 = vrot.lane.b32.xlu0 %v608, 96
        %v679 = vpop.permute.xlu0 %678
        %680 = vrot.lane.b32.xlu0 %v610, 96
        %v681 = vpop.permute.xlu0 %680
        %682 = vrot.lane.b32.xlu0 %v581, 96
        %v683 = vpop.permute.xlu0 %682
        %684 = vrot.lane.b32.xlu0 %v583, 96
        %v685 = vpop.permute.xlu0 %684
        %686 = vrot.lane.b32.xlu0 %v585, 96
        %v687 = vpop.permute.xlu0 %686
        %688 = vrot.lane.b32.xlu0 %v587, 96
        %v689 = vpop.permute.xlu0 %688
        %690 = vrot.lane.b32.xlu0 %v589, 96
        %v691 = vpop.permute.xlu0 %690
        %692 = vrot.lane.b32.xlu0 %v591, 96
        %v693 = vpop.permute.xlu0 %692
        %694 = vrot.lane.b32.xlu0 %v593, 96
        %v695 = vpop.permute.xlu0 %694
        %696 = vrot.lane.b32.xlu0 %v595, 96
        %v697 = vpop.permute.xlu0 %696
        %698 = vrot.lane.b32.xlu0 %v597, 96
        %v699 = vpop.permute.xlu0 %698
        %700 = vrot.lane.b32.xlu0 %v599, 96
        %v701 = vpop.permute.xlu0 %700
        %702 = vrot.lane.b32.xlu0 %v601, 96
        %v703 = vpop.permute.xlu0 %702
        %704 = vrot.lane.b32.xlu0 %v603, 96
        %v705 = vpop.permute.xlu0 %704
        %706 = vrot.lane.b32.xlu0 %v605, 96
        %v707 = vpop.permute.xlu0 %706
        %708 = vrot.lane.b32.xlu0 %v607, 96
        %v709 = vpop.permute.xlu0 %708
        %710 = vrot.lane.b32.xlu0 %v609, 96
        %v711 = vpop.permute.xlu0 %710
        %712 = vrot.lane.b32.xlu0 %v611, 96
        %v713 = vpop.permute.xlu0 %712
        %v714 = vlaneseq
        %v715 = vand.u32 %v714, 127
        %vm716 = vcmp.lt.s32.totalorder %v715, 96
        %v717 = vsel %vm716, %v651, %v683
        %v718 = vsel %vm716, %v653, %v685
        %v719 = vsel %vm716, %v655, %v687
        %v720 = vsel %vm716, %v657, %v689
        %v721 = vsel %vm716, %v659, %v691
        %v722 = vsel %vm716, %v661, %v693
        %v723 = vsel %vm716, %v663, %v695
        %v724 = vsel %vm716, %v665, %v697
        %v725 = vsel %vm716, %v667, %v699
        %v726 = vsel %vm716, %v669, %v701
        %v727 = vsel %vm716, %v671, %v703
        %v728 = vsel %vm716, %v673, %v705
        %v729 = vsel %vm716, %v675, %v707
        %v730 = vsel %vm716, %v677, %v709
        %v731 = vsel %vm716, %v679, %v711
        %v732 = vsel %vm716, %v681, %v713
        %v733 = vsel %vm716, %v683, %v651
        %v734 = vsel %vm716, %v685, %v653
        %v735 = vsel %vm716, %v687, %v655
        %v736 = vsel %vm716, %v689, %v657
        %v737 = vsel %vm716, %v691, %v659
        %v738 = vsel %vm716, %v693, %v661
        %v739 = vsel %vm716, %v695, %v663
        %v740 = vsel %vm716, %v697, %v665
        %v741 = vsel %vm716, %v699, %v667
        %v742 = vsel %vm716, %v701, %v669
        %v743 = vsel %vm716, %v703, %v671
        %v744 = vsel %vm716, %v705, %v673
        %v745 = vsel %vm716, %v707, %v675
        %v746 = vsel %vm716, %v709, %v677
        %v747 = vsel %vm716, %v711, %v679
        %v748 = vsel %vm716, %v713, %v681
        %v750 = vlaneseq
        %v751 = vshrl.u32 %v750, 7
        %v752 = vsub.s32 0, %v751
        %v753 = vrot.slane %v645, %v752
        %v754 = vlaneseq
        %v755 = vshrl.u32 %v754, 7
        %v756 = vsub.s32 1, %v755
        %v757 = vrot.slane %v645, %v756
        %v760 = vmul.f32 %v612, %v753
        %v761 = vmul.f32 %v613, %v757
        %v762 = vmul.f32 %v614, %v753
        %v763 = vmul.f32 %v615, %v757
        %v764 = vmul.f32 %v616, %v753
        %v765 = vmul.f32 %v617, %v757
        %v766 = vmul.f32 %v618, %v753
        %v767 = vmul.f32 %v619, %v757
        %v768 = vmul.f32 %v620, %v753
        %v769 = vmul.f32 %v621, %v757
        %v770 = vmul.f32 %v622, %v753
        %v771 = vmul.f32 %v623, %v757
        %v772 = vmul.f32 %v624, %v753
        %v773 = vmul.f32 %v625, %v757
        %v774 = vmul.f32 %v626, %v753
        %v775 = vmul.f32 %v627, %v757
        %v776 = vmul.f32 %v628, %v753
        %v777 = vmul.f32 %v629, %v757
        %v778 = vmul.f32 %v630, %v753
        %v779 = vmul.f32 %v631, %v757
        %v780 = vmul.f32 %v632, %v753
        %v781 = vmul.f32 %v633, %v757
        %v782 = vmul.f32 %v634, %v753
        %v783 = vmul.f32 %v635, %v757
        %v784 = vmul.f32 %v636, %v753
        %v785 = vmul.f32 %v637, %v757
        %v786 = vmul.f32 %v638, %v753
        %v787 = vmul.f32 %v639, %v757
        %v788 = vmul.f32 %v640, %v753
        %v789 = vmul.f32 %v641, %v757
        %v790 = vmul.f32 %v642, %v753
        %v791 = vmul.f32 %v643, %v757
        %v792 = vmul.f32 %v760, %v580
        %v793 = vmul.f32 %v761, %v581
        %v794 = vmul.f32 %v762, %v582
        %v795 = vmul.f32 %v763, %v583
        %v796 = vmul.f32 %v764, %v584
        %v797 = vmul.f32 %v765, %v585
        %v798 = vmul.f32 %v766, %v586
        %v799 = vmul.f32 %v767, %v587
        %v800 = vmul.f32 %v768, %v588
        %v801 = vmul.f32 %v769, %v589
        %v802 = vmul.f32 %v770, %v590
        %v803 = vmul.f32 %v771, %v591
        %v804 = vmul.f32 %v772, %v592
        %v805 = vmul.f32 %v773, %v593
        %v806 = vmul.f32 %v774, %v594
        %v807 = vmul.f32 %v775, %v595
        %v808 = vmul.f32 %v776, %v596
        %v809 = vmul.f32 %v777, %v597
        %v810 = vmul.f32 %v778, %v598
        %v811 = vmul.f32 %v779, %v599
        %v812 = vmul.f32 %v780, %v600
        %v813 = vmul.f32 %v781, %v601
        %v814 = vmul.f32 %v782, %v602
        %v815 = vmul.f32 %v783, %v603
        %v816 = vmul.f32 %v784, %v604
        %v817 = vmul.f32 %v785, %v605
        %v818 = vmul.f32 %v786, %v606
        %v819 = vmul.f32 %v787, %v607
        %v820 = vmul.f32 %v788, %v608
        %v821 = vmul.f32 %v789, %v609
        %v822 = vmul.f32 %v790, %v610
        %v823 = vmul.f32 %v791, %v611
        %v825 = vlaneseq
        %v826 = vshrl.u32 %v825, 7
        %v827 = vsub.s32 0, %v826
        %v828 = vrot.slane %v647, %v827
        %v829 = vlaneseq
        %v830 = vshrl.u32 %v829, 7
        %v831 = vsub.s32 1, %v830
        %v832 = vrot.slane %v647, %v831
        %v835 = vsub.f32 %v828, %v411
        %v836 = vsub.f32 %v832, %v411
        %v837 = vsub.f32 %v828, %v412
        %v838 = vsub.f32 %v832, %v412
        %v839 = vsub.f32 %v828, %v413
        %v840 = vsub.f32 %v832, %v413
        %v841 = vsub.f32 %v828, %v414
        %v842 = vsub.f32 %v832, %v414
        %v843 = vsub.f32 %v828, %v415
        %v844 = vsub.f32 %v832, %v415
        %v845 = vsub.f32 %v828, %v416
        %v846 = vsub.f32 %v832, %v416
        %v847 = vsub.f32 %v828, %v417
        %v848 = vsub.f32 %v832, %v417
        %v849 = vsub.f32 %v828, %v418
        %v850 = vsub.f32 %v832, %v418
        %v851 = vsub.f32 %v828, %v419
        %v852 = vsub.f32 %v832, %v419
        %v853 = vsub.f32 %v828, %v420
        %v854 = vsub.f32 %v832, %v420
        %v855 = vsub.f32 %v828, %v421
        %v856 = vsub.f32 %v832, %v421
        %v857 = vsub.f32 %v828, %v422
        %v858 = vsub.f32 %v832, %v422
        %v859 = vsub.f32 %v828, %v423
        %v860 = vsub.f32 %v832, %v423
        %v861 = vsub.f32 %v828, %v424
        %v862 = vsub.f32 %v832, %v424
        %v863 = vsub.f32 %v828, %v425
        %v864 = vsub.f32 %v832, %v425
        %v865 = vsub.f32 %v828, %v426
        %v866 = vsub.f32 %v832, %v426
        %v868 = vlaneseq
        %v869 = vshrl.u32 %v868, 7
        %v870 = vsub.s32 0, %v869
        %v871 = vrot.slane %v649, %v870
        %v872 = vlaneseq
        %v873 = vshrl.u32 %v872, 7
        %v874 = vsub.s32 1, %v873
        %v875 = vrot.slane %v649, %v874
        %v878 = vmul.f32 %v835, %v871
        %v879 = vmul.f32 %v836, %v875
        %v880 = vmul.f32 %v837, %v871
        %v881 = vmul.f32 %v838, %v875
        %v882 = vmul.f32 %v839, %v871
        %v883 = vmul.f32 %v840, %v875
        %v884 = vmul.f32 %v841, %v871
        %v885 = vmul.f32 %v842, %v875
        %v886 = vmul.f32 %v843, %v871
        %v887 = vmul.f32 %v844, %v875
        %v888 = vmul.f32 %v845, %v871
        %v889 = vmul.f32 %v846, %v875
        %v890 = vmul.f32 %v847, %v871
        %v891 = vmul.f32 %v848, %v875
        %v892 = vmul.f32 %v849, %v871
        %v893 = vmul.f32 %v850, %v875
        %v894 = vmul.f32 %v851, %v871
        %v895 = vmul.f32 %v852, %v875
        %v896 = vmul.f32 %v853, %v871
        %v897 = vmul.f32 %v854, %v875
        %v898 = vmul.f32 %v855, %v871
        %v899 = vmul.f32 %v856, %v875
        %v900 = vmul.f32 %v857, %v871
        %v901 = vmul.f32 %v858, %v875
        %v902 = vmul.f32 %v859, %v871
        %v903 = vmul.f32 %v860, %v875
        %v904 = vmul.f32 %v861, %v871
        %v905 = vmul.f32 %v862, %v875
        %v906 = vmul.f32 %v863, %v871
        %v907 = vmul.f32 %v864, %v875
        %v908 = vmul.f32 %v865, %v871
        %v909 = vmul.f32 %v866, %v875
        %v910 = vmul.f32 %v878, %v717
        %v911 = vmul.f32 %v879, %v733
        %v912 = vmul.f32 %v880, %v718
        %v913 = vmul.f32 %v881, %v734
        %v914 = vmul.f32 %v882, %v719
        %v915 = vmul.f32 %v883, %v735
        %v916 = vmul.f32 %v884, %v720
        %v917 = vmul.f32 %v885, %v736
        %v918 = vmul.f32 %v886, %v721
        %v919 = vmul.f32 %v887, %v737
        %v920 = vmul.f32 %v888, %v722
        %v921 = vmul.f32 %v889, %v738
        %v922 = vmul.f32 %v890, %v723
        %v923 = vmul.f32 %v891, %v739
        %v924 = vmul.f32 %v892, %v724
        %v925 = vmul.f32 %v893, %v740
        %v926 = vmul.f32 %v894, %v725
        %v927 = vmul.f32 %v895, %v741
        %v928 = vmul.f32 %v896, %v726
        %v929 = vmul.f32 %v897, %v742
        %v930 = vmul.f32 %v898, %v727
        %v931 = vmul.f32 %v899, %v743
        %v932 = vmul.f32 %v900, %v728
        %v933 = vmul.f32 %v901, %v744
        %v934 = vmul.f32 %v902, %v729
        %v935 = vmul.f32 %v903, %v745
        %v936 = vmul.f32 %v904, %v730
        %v937 = vmul.f32 %v905, %v746
        %v938 = vmul.f32 %v906, %v731
        %v939 = vmul.f32 %v907, %v747
        %v940 = vmul.f32 %v908, %v732
        %v941 = vmul.f32 %v909, %v748
        %v942 = vadd.f32 %v792, %v910
        %v943 = vadd.f32 %v793, %v911
        %v944 = vadd.f32 %v794, %v912
        %v945 = vadd.f32 %v795, %v913
        %v946 = vadd.f32 %v796, %v914
        %v947 = vadd.f32 %v797, %v915
        %v948 = vadd.f32 %v798, %v916
        %v949 = vadd.f32 %v799, %v917
        %v950 = vadd.f32 %v800, %v918
        %v951 = vadd.f32 %v801, %v919
        %v952 = vadd.f32 %v802, %v920
        %v953 = vadd.f32 %v803, %v921
        %v954 = vadd.f32 %v804, %v922
        %v955 = vadd.f32 %v805, %v923
        %v956 = vadd.f32 %v806, %v924
        %v957 = vadd.f32 %v807, %v925
        %v958 = vadd.f32 %v808, %v926
        %v959 = vadd.f32 %v809, %v927
        %v960 = vadd.f32 %v810, %v928
        %v961 = vadd.f32 %v811, %v929
        %v962 = vadd.f32 %v812, %v930
        %v963 = vadd.f32 %v813, %v931
        %v964 = vadd.f32 %v814, %v932
        %v965 = vadd.f32 %v815, %v933
        %v966 = vadd.f32 %v816, %v934
        %v967 = vadd.f32 %v817, %v935
        %v968 = vadd.f32 %v818, %v936
        %v969 = vadd.f32 %v819, %v937
        %v970 = vadd.f32 %v820, %v938
        %v971 = vadd.f32 %v821, %v939
        %v972 = vadd.f32 %v822, %v940
        %v973 = vadd.f32 %v823, %v941
        %s974 = scalar_lea.vmem %s1, 5
        %v975 = vld [vmem:[%s974] ss:$8 sm:$0x3]
        %s976 = scalar_lea.vmem %s1, 6
        %v977 = vld [vmem:[%s976] ss:$8 sm:$0x3]
        %s978 = scalar_lea.vmem %s1, 7
        %v979 = vld [vmem:[%s978] ss:$8 sm:$0x3]
        %980 = vrot.lane.b32.xlu0 %v942, 96
        %v981 = vpop.permute.xlu0 %980
        %982 = vrot.lane.b32.xlu0 %v944, 96
        %v983 = vpop.permute.xlu0 %982
        %984 = vrot.lane.b32.xlu0 %v946, 96
        %v985 = vpop.permute.xlu0 %984
        %986 = vrot.lane.b32.xlu0 %v948, 96
        %v987 = vpop.permute.xlu0 %986
        %988 = vrot.lane.b32.xlu0 %v950, 96
        %v989 = vpop.permute.xlu0 %988
        %990 = vrot.lane.b32.xlu0 %v952, 96
        %v991 = vpop.permute.xlu0 %990
        %992 = vrot.lane.b32.xlu0 %v954, 96
        %v993 = vpop.permute.xlu0 %992
        %994 = vrot.lane.b32.xlu0 %v956, 96
        %v995 = vpop.permute.xlu0 %994
        %996 = vrot.lane.b32.xlu0 %v958, 96
        %v997 = vpop.permute.xlu0 %996
        %998 = vrot.lane.b32.xlu0 %v960, 96
        %v999 = vpop.permute.xlu0 %998
        %1000 = vrot.lane.b32.xlu0 %v962, 96
        %v1001 = vpop.permute.xlu0 %1000
        %1002 = vrot.lane.b32.xlu0 %v964, 96
        %v1003 = vpop.permute.xlu0 %1002
        %1004 = vrot.lane.b32.xlu0 %v966, 96
        %v1005 = vpop.permute.xlu0 %1004
        %1006 = vrot.lane.b32.xlu0 %v968, 96
        %v1007 = vpop.permute.xlu0 %1006
        %1008 = vrot.lane.b32.xlu0 %v970, 96
        %v1009 = vpop.permute.xlu0 %1008
        %1010 = vrot.lane.b32.xlu0 %v972, 96
        %v1011 = vpop.permute.xlu0 %1010
        %1012 = vrot.lane.b32.xlu0 %v943, 96
        %v1013 = vpop.permute.xlu0 %1012
        %1014 = vrot.lane.b32.xlu0 %v945, 96
        %v1015 = vpop.permute.xlu0 %1014
        %1016 = vrot.lane.b32.xlu0 %v947, 96
        %v1017 = vpop.permute.xlu0 %1016
        %1018 = vrot.lane.b32.xlu0 %v949, 96
        %v1019 = vpop.permute.xlu0 %1018
        %1020 = vrot.lane.b32.xlu0 %v951, 96
        %v1021 = vpop.permute.xlu0 %1020
        %1022 = vrot.lane.b32.xlu0 %v953, 96
        %v1023 = vpop.permute.xlu0 %1022
        %1024 = vrot.lane.b32.xlu0 %v955, 96
        %v1025 = vpop.permute.xlu0 %1024
        %1026 = vrot.lane.b32.xlu0 %v957, 96
        %v1027 = vpop.permute.xlu0 %1026
        %1028 = vrot.lane.b32.xlu0 %v959, 96
        %v1029 = vpop.permute.xlu0 %1028
        %1030 = vrot.lane.b32.xlu0 %v961, 96
        %v1031 = vpop.permute.xlu0 %1030
        %1032 = vrot.lane.b32.xlu0 %v963, 96
        %v1033 = vpop.permute.xlu0 %1032
        %1034 = vrot.lane.b32.xlu0 %v965, 96
        %v1035 = vpop.permute.xlu0 %1034
        %1036 = vrot.lane.b32.xlu0 %v967, 96
        %v1037 = vpop.permute.xlu0 %1036
        %1038 = vrot.lane.b32.xlu0 %v969, 96
        %v1039 = vpop.permute.xlu0 %1038
        %1040 = vrot.lane.b32.xlu0 %v971, 96
        %v1041 = vpop.permute.xlu0 %1040
        %1042 = vrot.lane.b32.xlu0 %v973, 96
        %v1043 = vpop.permute.xlu0 %1042
        %v1044 = vsel %vm716, %v981, %v1013
        %v1045 = vsel %vm716, %v983, %v1015
        %v1046 = vsel %vm716, %v985, %v1017
        %v1047 = vsel %vm716, %v987, %v1019
        %v1048 = vsel %vm716, %v989, %v1021
        %v1049 = vsel %vm716, %v991, %v1023
        %v1050 = vsel %vm716, %v993, %v1025
        %v1051 = vsel %vm716, %v995, %v1027
        %v1052 = vsel %vm716, %v997, %v1029
        %v1053 = vsel %vm716, %v999, %v1031
        %v1054 = vsel %vm716, %v1001, %v1033
        %v1055 = vsel %vm716, %v1003, %v1035
        %v1056 = vsel %vm716, %v1005, %v1037
        %v1057 = vsel %vm716, %v1007, %v1039
        %v1058 = vsel %vm716, %v1009, %v1041
        %v1059 = vsel %vm716, %v1011, %v1043
        %v1060 = vsel %vm716, %v1013, %v981
        %v1061 = vsel %vm716, %v1015, %v983
        %v1062 = vsel %vm716, %v1017, %v985
        %v1063 = vsel %vm716, %v1019, %v987
        %v1064 = vsel %vm716, %v1021, %v989
        %v1065 = vsel %vm716, %v1023, %v991
        %v1066 = vsel %vm716, %v1025, %v993
        %v1067 = vsel %vm716, %v1027, %v995
        %v1068 = vsel %vm716, %v1029, %v997
        %v1069 = vsel %vm716, %v1031, %v999
        %v1070 = vsel %vm716, %v1033, %v1001
        %v1071 = vsel %vm716, %v1035, %v1003
        %v1072 = vsel %vm716, %v1037, %v1005
        %v1073 = vsel %vm716, %v1039, %v1007
        %v1074 = vsel %vm716, %v1041, %v1009
        %v1075 = vsel %vm716, %v1043, %v1011
        %v1077 = vlaneseq
        %v1078 = vshrl.u32 %v1077, 7
        %v1079 = vsub.s32 0, %v1078
        %v1080 = vrot.slane %v975, %v1079
        %v1081 = vlaneseq
        %v1082 = vshrl.u32 %v1081, 7
        %v1083 = vsub.s32 1, %v1082
        %v1084 = vrot.slane %v975, %v1083
        %v1087 = vmul.f32 %v612, %v1080
        %v1088 = vmul.f32 %v613, %v1084
        %v1089 = vmul.f32 %v614, %v1080
        %v1090 = vmul.f32 %v615, %v1084
        %v1091 = vmul.f32 %v616, %v1080
        %v1092 = vmul.f32 %v617, %v1084
        %v1093 = vmul.f32 %v618, %v1080
        %v1094 = vmul.f32 %v619, %v1084
        %v1095 = vmul.f32 %v620, %v1080
        %v1096 = vmul.f32 %v621, %v1084
        %v1097 = vmul.f32 %v622, %v1080
        %v1098 = vmul.f32 %v623, %v1084
        %v1099 = vmul.f32 %v624, %v1080
        %v1100 = vmul.f32 %v625, %v1084
        %v1101 = vmul.f32 %v626, %v1080
        %v1102 = vmul.f32 %v627, %v1084
        %v1103 = vmul.f32 %v628, %v1080
        %v1104 = vmul.f32 %v629, %v1084
        %v1105 = vmul.f32 %v630, %v1080
        %v1106 = vmul.f32 %v631, %v1084
        %v1107 = vmul.f32 %v632, %v1080
        %v1108 = vmul.f32 %v633, %v1084
        %v1109 = vmul.f32 %v634, %v1080
        %v1110 = vmul.f32 %v635, %v1084
        %v1111 = vmul.f32 %v636, %v1080
        %v1112 = vmul.f32 %v637, %v1084
        %v1113 = vmul.f32 %v638, %v1080
        %v1114 = vmul.f32 %v639, %v1084
        %v1115 = vmul.f32 %v640, %v1080
        %v1116 = vmul.f32 %v641, %v1084
        %v1117 = vmul.f32 %v642, %v1080
        %v1118 = vmul.f32 %v643, %v1084
        %v1119 = vmul.f32 %v1087, %v942
        %v1120 = vmul.f32 %v1088, %v943
        %v1121 = vmul.f32 %v1089, %v944
        %v1122 = vmul.f32 %v1090, %v945
        %v1123 = vmul.f32 %v1091, %v946
        %v1124 = vmul.f32 %v1092, %v947
        %v1125 = vmul.f32 %v1093, %v948
        %v1126 = vmul.f32 %v1094, %v949
        %v1127 = vmul.f32 %v1095, %v950
        %v1128 = vmul.f32 %v1096, %v951
        %v1129 = vmul.f32 %v1097, %v952
        %v1130 = vmul.f32 %v1098, %v953
        %v1131 = vmul.f32 %v1099, %v954
        %v1132 = vmul.f32 %v1100, %v955
        %v1133 = vmul.f32 %v1101, %v956
        %v1134 = vmul.f32 %v1102, %v957
        %v1135 = vmul.f32 %v1103, %v958
        %v1136 = vmul.f32 %v1104, %v959
        %v1137 = vmul.f32 %v1105, %v960
        %v1138 = vmul.f32 %v1106, %v961
        %v1139 = vmul.f32 %v1107, %v962
        %v1140 = vmul.f32 %v1108, %v963
        %v1141 = vmul.f32 %v1109, %v964
        %v1142 = vmul.f32 %v1110, %v965
        %v1143 = vmul.f32 %v1111, %v966
        %v1144 = vmul.f32 %v1112, %v967
        %v1145 = vmul.f32 %v1113, %v968
        %v1146 = vmul.f32 %v1114, %v969
        %v1147 = vmul.f32 %v1115, %v970
        %v1148 = vmul.f32 %v1116, %v971
        %v1149 = vmul.f32 %v1117, %v972
        %v1150 = vmul.f32 %v1118, %v973
        %v1152 = vlaneseq
        %v1153 = vshrl.u32 %v1152, 7
        %v1154 = vsub.s32 0, %v1153
        %v1155 = vrot.slane %v977, %v1154
        %v1156 = vlaneseq
        %v1157 = vshrl.u32 %v1156, 7
        %v1158 = vsub.s32 1, %v1157
        %v1159 = vrot.slane %v977, %v1158
        %v1162 = vsub.f32 %v1155, %v411
        %v1163 = vsub.f32 %v1159, %v411
        %v1164 = vsub.f32 %v1155, %v412
        %v1165 = vsub.f32 %v1159, %v412
        %v1166 = vsub.f32 %v1155, %v413
        %v1167 = vsub.f32 %v1159, %v413
        %v1168 = vsub.f32 %v1155, %v414
        %v1169 = vsub.f32 %v1159, %v414
        %v1170 = vsub.f32 %v1155, %v415
        %v1171 = vsub.f32 %v1159, %v415
        %v1172 = vsub.f32 %v1155, %v416
        %v1173 = vsub.f32 %v1159, %v416
        %v1174 = vsub.f32 %v1155, %v417
        %v1175 = vsub.f32 %v1159, %v417
        %v1176 = vsub.f32 %v1155, %v418
        %v1177 = vsub.f32 %v1159, %v418
        %v1178 = vsub.f32 %v1155, %v419
        %v1179 = vsub.f32 %v1159, %v419
        %v1180 = vsub.f32 %v1155, %v420
        %v1181 = vsub.f32 %v1159, %v420
        %v1182 = vsub.f32 %v1155, %v421
        %v1183 = vsub.f32 %v1159, %v421
        %v1184 = vsub.f32 %v1155, %v422
        %v1185 = vsub.f32 %v1159, %v422
        %v1186 = vsub.f32 %v1155, %v423
        %v1187 = vsub.f32 %v1159, %v423
        %v1188 = vsub.f32 %v1155, %v424
        %v1189 = vsub.f32 %v1159, %v424
        %v1190 = vsub.f32 %v1155, %v425
        %v1191 = vsub.f32 %v1159, %v425
        %v1192 = vsub.f32 %v1155, %v426
        %v1193 = vsub.f32 %v1159, %v426
        %v1195 = vlaneseq
        %v1196 = vshrl.u32 %v1195, 7
        %v1197 = vsub.s32 0, %v1196
        %v1198 = vrot.slane %v979, %v1197
        %v1199 = vlaneseq
        %v1200 = vshrl.u32 %v1199, 7
        %v1201 = vsub.s32 1, %v1200
        %v1202 = vrot.slane %v979, %v1201
        %v1205 = vmul.f32 %v1162, %v1198
        %v1206 = vmul.f32 %v1163, %v1202
        %v1207 = vmul.f32 %v1164, %v1198
        %v1208 = vmul.f32 %v1165, %v1202
        %v1209 = vmul.f32 %v1166, %v1198
        %v1210 = vmul.f32 %v1167, %v1202
        %v1211 = vmul.f32 %v1168, %v1198
        %v1212 = vmul.f32 %v1169, %v1202
        %v1213 = vmul.f32 %v1170, %v1198
        %v1214 = vmul.f32 %v1171, %v1202
        %v1215 = vmul.f32 %v1172, %v1198
        %v1216 = vmul.f32 %v1173, %v1202
        %v1217 = vmul.f32 %v1174, %v1198
        %v1218 = vmul.f32 %v1175, %v1202
        %v1219 = vmul.f32 %v1176, %v1198
        %v1220 = vmul.f32 %v1177, %v1202
        %v1221 = vmul.f32 %v1178, %v1198
        %v1222 = vmul.f32 %v1179, %v1202
        %v1223 = vmul.f32 %v1180, %v1198
        %v1224 = vmul.f32 %v1181, %v1202
        %v1225 = vmul.f32 %v1182, %v1198
        %v1226 = vmul.f32 %v1183, %v1202
        %v1227 = vmul.f32 %v1184, %v1198
        %v1228 = vmul.f32 %v1185, %v1202
        %v1229 = vmul.f32 %v1186, %v1198
        %v1230 = vmul.f32 %v1187, %v1202
        %v1231 = vmul.f32 %v1188, %v1198
        %v1232 = vmul.f32 %v1189, %v1202
        %v1233 = vmul.f32 %v1190, %v1198
        %v1234 = vmul.f32 %v1191, %v1202
        %v1235 = vmul.f32 %v1192, %v1198
        %v1236 = vmul.f32 %v1193, %v1202
        %v1237 = vmul.f32 %v1205, %v1044
        %v1238 = vmul.f32 %v1206, %v1060
        %v1239 = vmul.f32 %v1207, %v1045
        %v1240 = vmul.f32 %v1208, %v1061
        %v1241 = vmul.f32 %v1209, %v1046
        %v1242 = vmul.f32 %v1210, %v1062
        %v1243 = vmul.f32 %v1211, %v1047
        %v1244 = vmul.f32 %v1212, %v1063
        %v1245 = vmul.f32 %v1213, %v1048
        %v1246 = vmul.f32 %v1214, %v1064
        %v1247 = vmul.f32 %v1215, %v1049
        %v1248 = vmul.f32 %v1216, %v1065
        %v1249 = vmul.f32 %v1217, %v1050
        %v1250 = vmul.f32 %v1218, %v1066
        %v1251 = vmul.f32 %v1219, %v1051
        %v1252 = vmul.f32 %v1220, %v1067
        %v1253 = vmul.f32 %v1221, %v1052
        %v1254 = vmul.f32 %v1222, %v1068
        %v1255 = vmul.f32 %v1223, %v1053
        %v1256 = vmul.f32 %v1224, %v1069
        %v1257 = vmul.f32 %v1225, %v1054
        %v1258 = vmul.f32 %v1226, %v1070
        %v1259 = vmul.f32 %v1227, %v1055
        %v1260 = vmul.f32 %v1228, %v1071
        %v1261 = vmul.f32 %v1229, %v1056
        %v1262 = vmul.f32 %v1230, %v1072
        %v1263 = vmul.f32 %v1231, %v1057
        %v1264 = vmul.f32 %v1232, %v1073
        %v1265 = vmul.f32 %v1233, %v1058
        %v1266 = vmul.f32 %v1234, %v1074
        %v1267 = vmul.f32 %v1235, %v1059
        %v1268 = vmul.f32 %v1236, %v1075
        %v1269 = vadd.f32 %v1119, %v1237
        %v1270 = vadd.f32 %v1120, %v1238
        %v1271 = vadd.f32 %v1121, %v1239
        %v1272 = vadd.f32 %v1122, %v1240
        %v1273 = vadd.f32 %v1123, %v1241
        %v1274 = vadd.f32 %v1124, %v1242
        %v1275 = vadd.f32 %v1125, %v1243
        %v1276 = vadd.f32 %v1126, %v1244
        %v1277 = vadd.f32 %v1127, %v1245
        %v1278 = vadd.f32 %v1128, %v1246
        %v1279 = vadd.f32 %v1129, %v1247
        %v1280 = vadd.f32 %v1130, %v1248
        %v1281 = vadd.f32 %v1131, %v1249
        %v1282 = vadd.f32 %v1132, %v1250
        %v1283 = vadd.f32 %v1133, %v1251
        %v1284 = vadd.f32 %v1134, %v1252
        %v1285 = vadd.f32 %v1135, %v1253
        %v1286 = vadd.f32 %v1136, %v1254
        %v1287 = vadd.f32 %v1137, %v1255
        %v1288 = vadd.f32 %v1138, %v1256
        %v1289 = vadd.f32 %v1139, %v1257
        %v1290 = vadd.f32 %v1140, %v1258
        %v1291 = vadd.f32 %v1141, %v1259
        %v1292 = vadd.f32 %v1142, %v1260
        %v1293 = vadd.f32 %v1143, %v1261
        %v1294 = vadd.f32 %v1144, %v1262
        %v1295 = vadd.f32 %v1145, %v1263
        %v1296 = vadd.f32 %v1146, %v1264
        %v1297 = vadd.f32 %v1147, %v1265
        %v1298 = vadd.f32 %v1148, %v1266
        %v1299 = vadd.f32 %v1149, %v1267
        %v1300 = vadd.f32 %v1150, %v1268
        %vm1301 = vcmp.ge.f32.partialorder %v200, 0.0
        %vm1302 = vcmp.ge.f32.partialorder %v201, 0.0
        %vm1303 = vcmp.ge.f32.partialorder %v202, 0.0
        %vm1304 = vcmp.ge.f32.partialorder %v203, 0.0
        %vm1305 = vcmp.ge.f32.partialorder %v204, 0.0
        %vm1306 = vcmp.ge.f32.partialorder %v205, 0.0
        %vm1307 = vcmp.ge.f32.partialorder %v206, 0.0
        %vm1308 = vcmp.ge.f32.partialorder %v207, 0.0
        %vm1309 = vcmp.ge.f32.partialorder %v208, 0.0
        %vm1310 = vcmp.ge.f32.partialorder %v209, 0.0
        %vm1311 = vcmp.ge.f32.partialorder %v210, 0.0
        %vm1312 = vcmp.ge.f32.partialorder %v211, 0.0
        %vm1313 = vcmp.ge.f32.partialorder %v212, 0.0
        %vm1314 = vcmp.ge.f32.partialorder %v213, 0.0
        %vm1315 = vcmp.ge.f32.partialorder %v214, 0.0
        %vm1316 = vcmp.ge.f32.partialorder %v215, 0.0
        %v1317 = vmul.f32 %v200, 0.01
        %v1318 = vmul.f32 %v201, 0.01
        %v1319 = vmul.f32 %v202, 0.01
        %v1320 = vmul.f32 %v203, 0.01
        %v1321 = vmul.f32 %v204, 0.01
        %v1322 = vmul.f32 %v205, 0.01
        %v1323 = vmul.f32 %v206, 0.01
        %v1324 = vmul.f32 %v207, 0.01
        %v1325 = vmul.f32 %v208, 0.01
        %v1326 = vmul.f32 %v209, 0.01
        %v1327 = vmul.f32 %v210, 0.01
        %v1328 = vmul.f32 %v211, 0.01
        %v1329 = vmul.f32 %v212, 0.01
        %v1330 = vmul.f32 %v213, 0.01
        %v1331 = vmul.f32 %v214, 0.01
        %v1332 = vmul.f32 %v215, 0.01
        %v1333 = vsel %vm1301, %v200, %v1317
        %v1334 = vsel %vm1302, %v201, %v1318
        %v1335 = vsel %vm1303, %v202, %v1319
        %v1336 = vsel %vm1304, %v203, %v1320
        %v1337 = vsel %vm1305, %v204, %v1321
        %v1338 = vsel %vm1306, %v205, %v1322
        %v1339 = vsel %vm1307, %v206, %v1323
        %v1340 = vsel %vm1308, %v207, %v1324
        %v1341 = vsel %vm1309, %v208, %v1325
        %v1342 = vsel %vm1310, %v209, %v1326
        %v1343 = vsel %vm1311, %v210, %v1327
        %v1344 = vsel %vm1312, %v211, %v1328
        %v1345 = vsel %vm1313, %v212, %v1329
        %v1346 = vsel %vm1314, %v213, %v1330
        %v1347 = vsel %vm1315, %v214, %v1331
        %v1348 = vsel %vm1316, %v215, %v1332
        %v1349 = vpack.c.bf16 %v1271, %v1269
        %v1350 = vpack.c.bf16 %v1272, %v1270
        %v1351 = vpack.c.bf16 %v1275, %v1273
        %v1352 = vpack.c.bf16 %v1276, %v1274
        %v1353 = vpack.c.bf16 %v1279, %v1277
        %v1354 = vpack.c.bf16 %v1280, %v1278
        %v1355 = vpack.c.bf16 %v1283, %v1281
        %v1356 = vpack.c.bf16 %v1284, %v1282
        %v1357 = vpack.c.bf16 %v1287, %v1285
        %v1358 = vpack.c.bf16 %v1288, %v1286
        %v1359 = vpack.c.bf16 %v1291, %v1289
        %v1360 = vpack.c.bf16 %v1292, %v1290
        %v1361 = vpack.c.bf16 %v1295, %v1293
        %v1362 = vpack.c.bf16 %v1296, %v1294
        %v1363 = vpack.c.bf16 %v1299, %v1297
        %v1364 = vpack.c.bf16 %v1300, %v1298
        %v1365 = vld [vmem:[%s2] sm:$0xf]
        %v1366 = vld [vmem:[%s2 + $0x4] sm:$0xf]
        %v1367 = vld [vmem:[%s2 + $0x8] sm:$0xf]
        %v1368 = vld [vmem:[%s2 + $0xc] sm:$0xf]
        %v1369 = vld [vmem:[%s2 + $0x10] sm:$0xf]
        %v1370 = vld [vmem:[%s2 + $0x14] sm:$0xf]
        %v1371 = vld [vmem:[%s2 + $0x18] sm:$0xf]
        %v1372 = vld [vmem:[%s2 + $0x1c] sm:$0xf]
        %v1373 = vld [vmem:[%s2 + $0x20] sm:$0xf]
        %v1374 = vld [vmem:[%s2 + $0x24] sm:$0xf]
        %v1375 = vld [vmem:[%s2 + $0x28] sm:$0xf]
        %v1376 = vld [vmem:[%s2 + $0x2c] sm:$0xf]
        %v1377 = vld [vmem:[%s2 + $0x30] sm:$0xf]
        %v1378 = vld [vmem:[%s2 + $0x34] sm:$0xf]
        %v1379 = vld [vmem:[%s2 + $0x38] sm:$0xf]
        %v1380 = vld [vmem:[%s2 + $0x3c] sm:$0xf]
        %v1381 = vld [vmem:[%s2 + $0x40] sm:$0xf]
        %v1382 = vld [vmem:[%s2 + $0x44] sm:$0xf]
        %v1383 = vld [vmem:[%s2 + $0x48] sm:$0xf]
        %v1384 = vld [vmem:[%s2 + $0x4c] sm:$0xf]
        %v1385 = vld [vmem:[%s2 + $0x50] sm:$0xf]
        %v1386 = vld [vmem:[%s2 + $0x54] sm:$0xf]
        %v1387 = vld [vmem:[%s2 + $0x58] sm:$0xf]
        %v1388 = vld [vmem:[%s2 + $0x5c] sm:$0xf]
        %v1389 = vld [vmem:[%s2 + $0x60] sm:$0xf]
        %v1390 = vld [vmem:[%s2 + $0x64] sm:$0xf]
        %v1391 = vld [vmem:[%s2 + $0x68] sm:$0xf]
        %v1392 = vld [vmem:[%s2 + $0x6c] sm:$0xf]
        %v1393 = vld [vmem:[%s2 + $0x70] sm:$0xf]
        %v1394 = vld [vmem:[%s2 + $0x74] sm:$0xf]
        %v1395 = vld [vmem:[%s2 + $0x78] sm:$0xf]
        %v1396 = vld [vmem:[%s2 + $0x7c] sm:$0xf]
        %v1397 = vld [vmem:[%s3] sm:$0xff]
        %v1398 = vld [vmem:[%s3 + $0x8] sm:$0xff]
        %v1399 = vld [vmem:[%s3 + $0x10] sm:$0xff]
        %v1400 = vld [vmem:[%s3 + $0x18] sm:$0xff]
        %v1402 = vsel %vm376, %v1333, 0
        %v1405 = vsel %vm376, %v1334, 0
        %v1408 = vsel %vm376, %v1335, 0
        %v1411 = vsel %vm376, %v1336, 0
        %v1414 = vsel %vm376, %v1337, 0
        %v1417 = vsel %vm376, %v1338, 0
        %v1420 = vsel %vm376, %v1339, 0
        %v1423 = vsel %vm376, %v1340, 0
        %v1426 = vsel %vm376, %v1341, 0
        %v1429 = vsel %vm376, %v1342, 0
        %v1432 = vsel %vm376, %v1343, 0
        %v1435 = vsel %vm376, %v1344, 0
        %v1438 = vsel %vm376, %v1345, 0
        %v1441 = vsel %vm376, %v1346, 0
        %v1444 = vsel %vm376, %v1347, 0
        %v1447 = vsel %vm376, %v1348, 0
        %1449 = vmatprep.subr.mxu0 0.0
        %1450 = vmatpush1.msra.mxu0 %v1397
        %1451 = vmatprep.subr.mxu0 0.0
        %1452 = vmatpush1.msra.mxu0 %v1398
        %1453 = vmatprep.subr.mxu0 0.0
        %1454 = vmatpush1.msra.mxu0 %v1399
        %1455 = vmatprep.subr.mxu0 0.0
        %1456 = vmatpush1.msra.mxu0 %v1400
        %1457 = vmatprep.subr.mxu0 0.0
        %1458 = vmatpush1.msra.mxu0 0.0
        %1459 = vmatprep.subr.mxu0 0.0
        %1460 = vmatpush1.msra.mxu0 0.0
        %1461 = vmatprep.subr.mxu0 0.0
        %1462 = vmatpush1.msra.mxu0 0.0
        %1463 = vmatprep.subr.mxu0 0.0
        %1464 = vmatpush1.msra.mxu0 0.0
        %1465 = vmatprep.subr.mxu0 0.0
        %1466 = vmatpush1.msra.mxu0 0.0
        %1467 = vmatprep.subr.mxu0 0.0
        %1468 = vmatpush1.msra.mxu0 0.0
        %1469 = vmatprep.subr.mxu0 0.0
        %1470 = vmatpush1.msra.mxu0 0.0
        %1471 = vmatprep.subr.mxu0 0.0
        %1472 = vmatpush1.msra.mxu0 0.0
        %1473 = vmatprep.subr.mxu0 0.0
        %1474 = vmatpush1.msra.mxu0 0.0
        %1475 = vmatprep.subr.mxu0 0.0
        %1476 = vmatpush1.msra.mxu0 0.0
        %1477 = vmatprep.subr.mxu0 0.0
        %1478 = vmatpush1.msra.mxu0 0.0
        %1479 = vmatprep.subr.mxu0 0.0
        %1480 = vmatpush1.msra.mxu0 0.0
        %1481 = vmatprep.subr.mxu0 0.0
        %1482 = vmatpush1.msra.mxu0 0.0
        %1483 = vmatprep.subr.mxu0 0.0
        %1484 = vmatpush1.msra.mxu0 0.0
        %1485 = vmatprep.subr.mxu0 0.0
        %1486 = vmatpush1.msra.mxu0 0.0
        %1487 = vmatprep.subr.mxu0 0.0
        %1488 = vmatpush1.msra.mxu0 0.0
        %1489 = vmatprep.subr.mxu0 0.0
        %1490 = vmatpush1.msra.mxu0 0.0
        %1491 = vmatprep.subr.mxu0 0.0
        %1492 = vmatpush1.msra.mxu0 0.0
        %1493 = vmatprep.subr.mxu0 0.0
        %1494 = vmatpush1.msra.mxu0 0.0
        %1495 = vmatprep.subr.mxu0 0.0
        %1496 = vmatpush1.msra.mxu0 0.0
        %1497 = vmatprep.subr.mxu0 0.0
        %1498 = vmatpush1.msra.mxu0 0.0
        %1499 = vmatprep.subr.mxu0 0.0
        %1500 = vmatpush1.msra.mxu0 0.0
        %1501 = vmatprep.subr.mxu0 0.0
        %1502 = vmatpush1.msra.mxu0 0.0
        %1503 = vmatprep.subr.mxu0 0.0
        %1504 = vmatpush1.msra.mxu0 0.0
        %1505 = vmatprep.subr.mxu0 0.0
        %1506 = vmatpush1.msra.mxu0 0.0
        %1507 = vmatprep.subr.mxu0 0.0
        %1508 = vmatpush1.msra.mxu0 0.0
        %1509 = vmatprep.subr.mxu0 0.0
        %1510 = vmatpush1.msra.mxu0 0.0
        %1511 = vmatprep.subr.mxu0 0.0
        %1512 = vmatpush1.msra.mxu0 0.0
        %1513 = vmatprep.mubr.f32.mxu0 0.0
        %1514 = vmatmul.mubr.f32.gmra.mrb[0].mxu0 %v1402
        %v1515 = vpop.f32.mrb[0].mxu0
        %v1516 = vadd.f32 0.0, %v1515
        %v1517 = vpop.f32.mrb[0].mxu0
        %1518 = vmatprep.mubr.f32.mxu0 0.0
        %1519 = vmatmul.mubr.f32.gmra.mrb[0].mxu0 %v1405
        %v1520 = vpop.f32.mrb[0].mxu0
        %v1521 = vadd.f32 0.0, %v1520
        %v1522 = vpop.f32.mrb[0].mxu0
        %1523 = vmatprep.mubr.f32.mxu0 0.0
        %1524 = vmatmul.mubr.f32.gmra.mrb[0].mxu0 %v1408
        %v1525 = vpop.f32.mrb[0].mxu0
        %v1526 = vadd.f32 0.0, %v1525
        %v1527 = vpop.f32.mrb[0].mxu0
        %1528 = vmatprep.mubr.f32.mxu0 0.0
        %1529 = vmatmul.mubr.f32.gmra.mrb[0].mxu0 %v1411
        %v1530 = vpop.f32.mrb[0].mxu0
        %v1531 = vadd.f32 0.0, %v1530
        %v1532 = vpop.f32.mrb[0].mxu0
        %1533 = vmatprep.mubr.f32.mxu0 0.0
        %1534 = vmatmul.mubr.f32.gmra.mrb[0].mxu0 %v1414
        %v1535 = vpop.f32.mrb[0].mxu0
        %v1536 = vadd.f32 0.0, %v1535
        %v1537 = vpop.f32.mrb[0].mxu0
        %1538 = vmatprep.mubr.f32.mxu0 0.0
        %1539 = vmatmul.mubr.f32.gmra.mrb[0].mxu0 %v1417
        %v1540 = vpop.f32.mrb[0].mxu0
        %v1541 = vadd.f32 0.0, %v1540
        %v1542 = vpop.f32.mrb[0].mxu0
        %1543 = vmatprep.mubr.f32.mxu0 0.0
        %1544 = vmatmul.mubr.f32.gmra.mrb[0].mxu0 %v1420
        %v1545 = vpop.f32.mrb[0].mxu0
        %v1546 = vadd.f32 0.0, %v1545
        %v1547 = vpop.f32.mrb[0].mxu0
        %1548 = vmatprep.mubr.f32.mxu0 0.0
        %1549 = vmatmul.mubr.f32.gmra.mrb[0].mxu0 %v1423
        %v1550 = vpop.f32.mrb[0].mxu0
        %v1551 = vadd.f32 0.0, %v1550
        %v1552 = vpop.f32.mrb[0].mxu0
        %1553 = vmatprep.mubr.f32.mxu0 0.0
        %1554 = vmatmul.mubr.f32.gmra.mrb[0].mxu0 %v1426
        %v1555 = vpop.f32.mrb[0].mxu0
        %v1556 = vadd.f32 0.0, %v1555
        %v1557 = vpop.f32.mrb[0].mxu0
        %1558 = vmatprep.mubr.f32.mxu0 0.0
        %1559 = vmatmul.mubr.f32.gmra.mrb[0].mxu0 %v1429
        %v1560 = vpop.f32.mrb[0].mxu0
        %v1561 = vadd.f32 0.0, %v1560
        %v1562 = vpop.f32.mrb[0].mxu0
        %1563 = vmatprep.mubr.f32.mxu0 0.0
        %1564 = vmatmul.mubr.f32.gmra.mrb[0].mxu0 %v1432
        %v1565 = vpop.f32.mrb[0].mxu0
        %v1566 = vadd.f32 0.0, %v1565
        %v1567 = vpop.f32.mrb[0].mxu0
        %1568 = vmatprep.mubr.f32.mxu0 0.0
        %1569 = vmatmul.mubr.f32.gmra.mrb[0].mxu0 %v1435
        %v1570 = vpop.f32.mrb[0].mxu0
        %v1571 = vadd.f32 0.0, %v1570
        %v1572 = vpop.f32.mrb[0].mxu0
        %1573 = vmatprep.mubr.f32.mxu0 0.0
        %1574 = vmatmul.mubr.f32.gmra.mrb[0].mxu0 %v1438
        %v1575 = vpop.f32.mrb[0].mxu0
        %v1576 = vadd.f32 0.0, %v1575
        %v1577 = vpop.f32.mrb[0].mxu0
        %1578 = vmatprep.mubr.f32.mxu0 0.0
        %1579 = vmatmul.mubr.f32.gmra.mrb[0].mxu0 %v1441
        %v1580 = vpop.f32.mrb[0].mxu0
        %v1581 = vadd.f32 0.0, %v1580
        %v1582 = vpop.f32.mrb[0].mxu0
        %1583 = vmatprep.mubr.f32.mxu0 0.0
        %1584 = vmatmul.mubr.f32.gmra.mrb[0].mxu0 %v1444
        %v1585 = vpop.f32.mrb[0].mxu0
        %v1586 = vadd.f32 0.0, %v1585
        %v1587 = vpop.f32.mrb[0].mxu0
        %1588 = vmatprep.mubr.f32.mxu0 0.0
        %1589 = vmatmul.mubr.f32.gmra.mrb[0].mxu0 %v1447
        %v1590 = vpop.f32.mrb[0].mxu0
        %v1591 = vadd.f32 0.0, %v1590
        %v1592 = vpop.f32.mrb[0].mxu0
        %1593 = vdwg.mxu0
        %v1626 = vunpack.c.l.b16 %v1365
        %v1627 = vunpack.c.l.b16 %v1366
        %v1628 = vunpack.c.l.b16 %v1367
        %v1629 = vunpack.c.l.b16 %v1368
        %v1630 = vunpack.c.l.b16 %v1369
        %v1631 = vunpack.c.l.b16 %v1370
        %v1632 = vunpack.c.l.b16 %v1371
        %v1633 = vunpack.c.l.b16 %v1372
        %v1634 = vunpack.c.l.b16 %v1373
        %v1635 = vunpack.c.l.b16 %v1374
        %v1636 = vunpack.c.l.b16 %v1375
        %v1637 = vunpack.c.l.b16 %v1376
        %v1638 = vunpack.c.l.b16 %v1377
        %v1639 = vunpack.c.l.b16 %v1378
        %v1640 = vunpack.c.l.b16 %v1379
        %v1641 = vunpack.c.l.b16 %v1380
        %v1642 = vunpack.c.l.b16 %v1381
        %v1643 = vunpack.c.l.b16 %v1382
        %v1644 = vunpack.c.l.b16 %v1383
        %v1645 = vunpack.c.l.b16 %v1384
        %v1646 = vunpack.c.l.b16 %v1385
        %v1647 = vunpack.c.l.b16 %v1386
        %v1648 = vunpack.c.l.b16 %v1387
        %v1649 = vunpack.c.l.b16 %v1388
        %v1650 = vunpack.c.l.b16 %v1389
        %v1651 = vunpack.c.l.b16 %v1390
        %v1652 = vunpack.c.l.b16 %v1391
        %v1653 = vunpack.c.l.b16 %v1392
        %v1654 = vunpack.c.l.b16 %v1393
        %v1655 = vunpack.c.l.b16 %v1394
        %v1656 = vunpack.c.l.b16 %v1395
        %v1657 = vunpack.c.l.b16 %v1396
        %v1658 = vpack.c.b16 %v1627, %v1626
        %v1659 = vpack.c.b16 %v1629, %v1628
        %v1660 = vpack.c.b16 %v1631, %v1630
        %v1661 = vpack.c.b16 %v1633, %v1632
        %v1662 = vpack.c.b16 %v1635, %v1634
        %v1663 = vpack.c.b16 %v1637, %v1636
        %v1664 = vpack.c.b16 %v1639, %v1638
        %v1665 = vpack.c.b16 %v1641, %v1640
        %v1666 = vpack.c.b16 %v1643, %v1642
        %v1667 = vpack.c.b16 %v1645, %v1644
        %v1668 = vpack.c.b16 %v1647, %v1646
        %v1669 = vpack.c.b16 %v1649, %v1648
        %v1670 = vpack.c.b16 %v1651, %v1650
        %v1671 = vpack.c.b16 %v1653, %v1652
        %v1672 = vpack.c.b16 %v1655, %v1654
        %v1673 = vpack.c.b16 %v1657, %v1656
        %1690 = vmatprep.subr.bf16.mxu0 0
        %1691 = vmatpush1.bf16.msra.mxu0 %v1658
        %1692 = vmatprep.subr.bf16.mxu0 0
        %1693 = vmatpush1.bf16.msra.mxu0 %v1659
        %1694 = vmatprep.subr.bf16.mxu0 0
        %1695 = vmatpush1.bf16.msra.mxu0 %v1660
        %1696 = vmatprep.subr.bf16.mxu0 0
        %1697 = vmatpush1.bf16.msra.mxu0 %v1661
        %1698 = vmatprep.subr.bf16.mxu0 0
        %1699 = vmatpush1.bf16.msra.mxu0 %v1662
        %1700 = vmatprep.subr.bf16.mxu0 0
        %1701 = vmatpush1.bf16.msra.mxu0 %v1663
        %1702 = vmatprep.subr.bf16.mxu0 0
        %1703 = vmatpush1.bf16.msra.mxu0 %v1664
        %1704 = vmatprep.subr.bf16.mxu0 0
        %1705 = vmatpush1.bf16.msra.mxu0 %v1665
        %1706 = vmatprep.subr.bf16.mxu0 0
        %1707 = vmatpush1.bf16.msra.mxu0 %v1666
        %1708 = vmatprep.subr.bf16.mxu0 0
        %1709 = vmatpush1.bf16.msra.mxu0 %v1667
        %1710 = vmatprep.subr.bf16.mxu0 0
        %1711 = vmatpush1.bf16.msra.mxu0 %v1668
        %1712 = vmatprep.subr.bf16.mxu0 0
        %1713 = vmatpush1.bf16.msra.mxu0 %v1669
        %1714 = vmatprep.subr.bf16.mxu0 0
        %1715 = vmatpush1.bf16.msra.mxu0 %v1670
        %1716 = vmatprep.subr.bf16.mxu0 0
        %1717 = vmatpush1.bf16.msra.mxu0 %v1671
        %1718 = vmatprep.subr.bf16.mxu0 0
        %1719 = vmatpush1.bf16.msra.mxu0 %v1672
        %1720 = vmatprep.subr.bf16.mxu0 0
        %1721 = vmatpush1.bf16.msra.mxu0 %v1673
        %1722 = vmatprep.mubr.bf16.mxu0 %v1350
        %1723 = vmatmul.mubr.bf16.gmra.mrb[0].mxu0 %v1349
        %v1724 = vpop.f32.mrb[0].mxu0
        %v1725 = vadd.f32 %v1516, %v1724
        %v1726 = vpop.f32.mrb[0].mxu0
        %v1727 = vpop.f32.mrb[0].mxu0
        %v1728 = vadd.f32 %v1521, %v1727
        %v1729 = vpop.f32.mrb[0].mxu0
        %1730 = vmatprep.mubr.bf16.mxu0 %v1352
        %1731 = vmatmul.mubr.bf16.gmra.mrb[0].mxu0 %v1351
        %v1732 = vpop.f32.mrb[0].mxu0
        %v1733 = vadd.f32 %v1526, %v1732
        %v1734 = vpop.f32.mrb[0].mxu0
        %v1735 = vpop.f32.mrb[0].mxu0
        %v1736 = vadd.f32 %v1531, %v1735
        %v1737 = vpop.f32.mrb[0].mxu0
        %1738 = vmatprep.mubr.bf16.mxu0 %v1354
        %1739 = vmatmul.mubr.bf16.gmra.mrb[0].mxu0 %v1353
        %v1740 = vpop.f32.mrb[0].mxu0
        %v1741 = vadd.f32 %v1536, %v1740
        %v1742 = vpop.f32.mrb[0].mxu0
        %v1743 = vpop.f32.mrb[0].mxu0
        %v1744 = vadd.f32 %v1541, %v1743
        %v1745 = vpop.f32.mrb[0].mxu0
        %1746 = vmatprep.mubr.bf16.mxu0 %v1356
        %1747 = vmatmul.mubr.bf16.gmra.mrb[0].mxu0 %v1355
        %v1748 = vpop.f32.mrb[0].mxu0
        %v1749 = vadd.f32 %v1546, %v1748
        %v1750 = vpop.f32.mrb[0].mxu0
        %v1751 = vpop.f32.mrb[0].mxu0
        %v1752 = vadd.f32 %v1551, %v1751
        %v1753 = vpop.f32.mrb[0].mxu0
        %1754 = vmatprep.mubr.bf16.mxu0 %v1358
        %1755 = vmatmul.mubr.bf16.gmra.mrb[0].mxu0 %v1357
        %v1756 = vpop.f32.mrb[0].mxu0
        %v1757 = vadd.f32 %v1556, %v1756
        %v1758 = vpop.f32.mrb[0].mxu0
        %v1759 = vpop.f32.mrb[0].mxu0
        %v1760 = vadd.f32 %v1561, %v1759
        %v1761 = vpop.f32.mrb[0].mxu0
        %1762 = vmatprep.mubr.bf16.mxu0 %v1360
        %1763 = vmatmul.mubr.bf16.gmra.mrb[0].mxu0 %v1359
        %v1764 = vpop.f32.mrb[0].mxu0
        %v1765 = vadd.f32 %v1566, %v1764
        %v1766 = vpop.f32.mrb[0].mxu0
        %v1767 = vpop.f32.mrb[0].mxu0
        %v1768 = vadd.f32 %v1571, %v1767
        %v1769 = vpop.f32.mrb[0].mxu0
        %1770 = vmatprep.mubr.bf16.mxu0 %v1362
        %1771 = vmatmul.mubr.bf16.gmra.mrb[0].mxu0 %v1361
        %v1772 = vpop.f32.mrb[0].mxu0
        %v1773 = vadd.f32 %v1576, %v1772
        %v1774 = vpop.f32.mrb[0].mxu0
        %v1775 = vpop.f32.mrb[0].mxu0
        %v1776 = vadd.f32 %v1581, %v1775
        %v1777 = vpop.f32.mrb[0].mxu0
        %1778 = vmatprep.mubr.bf16.mxu0 %v1364
        %1779 = vmatmul.mubr.bf16.gmra.mrb[0].mxu0 %v1363
        %v1780 = vpop.f32.mrb[0].mxu0
        %v1781 = vadd.f32 %v1586, %v1780
        %v1782 = vpop.f32.mrb[0].mxu0
        %v1783 = vpop.f32.mrb[0].mxu0
        %v1784 = vadd.f32 %v1591, %v1783
        %v1785 = vpop.f32.mrb[0].mxu0
        %1786 = vdwg.mxu0
        %1787 = vst [vmem:[%s191] sm:$0xff] %v1725
        %1788 = vst [vmem:[%s191 + $0x8] sm:$0xff] %v1728
        %1789 = vst [vmem:[%s191 + $0x10] sm:$0xff] %v1733
        %1790 = vst [vmem:[%s191 + $0x18] sm:$0xff] %v1736
        %1791 = vst [vmem:[%s191 + $0x20] sm:$0xff] %v1741
        %1792 = vst [vmem:[%s191 + $0x28] sm:$0xff] %v1744
        %1793 = vst [vmem:[%s191 + $0x30] sm:$0xff] %v1749
        %1794 = vst [vmem:[%s191 + $0x38] sm:$0xff] %v1752
        %1795 = vst [vmem:[%s191 + $0x40] sm:$0xff] %v1757
        %1796 = vst [vmem:[%s191 + $0x48] sm:$0xff] %v1760
        %1797 = vst [vmem:[%s191 + $0x50] sm:$0xff] %v1765
        %1798 = vst [vmem:[%s191 + $0x58] sm:$0xff] %v1768
        %1799 = vst [vmem:[%s191 + $0x60] sm:$0xff] %v1773
        %1800 = vst [vmem:[%s191 + $0x68] sm:$0xff] %v1776
        %1801 = vst [vmem:[%s191 + $0x70] sm:$0xff] %v1781
        %1802 = vst [vmem:[%s191 + $0x78] sm:$0xff] %v1784
        %s1803 = sand.u32 %s115, 1
        %s1804 = scalar_lea.sflag [#allocation3], %s1803
        %s1805 = sand.u32 %s115, 1
        %s1806 = smul.addr %s1805, 128
        %s1807 = scalar_lea.vmem [#allocation2], %s1806
        // Predicated region
        $region37: #{tpu_custom_call.1} parent=35 // pred_check
          %p1808 = pneg %p125
        $region38: #{tpu_custom_call.1} parent=35 // pred_check_branch
          %1810 = sbr.rel (%p1808) target = $region40
        $region39: #{tpu_custom_call.1} parent=35 // pred_region
          %s1811 = smul.u32 16, %s18
          %s1813 = ssub.s32 2048, 2048
          %1814 = vsyncadd %s1804, %s1813
          %s1815 = smul.addr %s1811, 128
          %s1816 = scalar_lea.hbm %s4, %s1815
          %s1817 = sshll.u32 %s1807, 4
          %s1818 = int_to_ptr.vmem [resolvable:$true] %s1817
          %1823 = dma.vmem_to_hbm [thread:$0]  %s1818, 2048, %s1816, %s1804, 128, 128, 8
        $region40: #{tpu_custom_call.1} parent=35 // pred_fallthru
          _
      $region36: #{tpu_custom_call.1} parent=5 // pred_fallthru
        _
      %p1824 = scmp.le.s32.totalorder 2, %s13
      // Predicated region
      $region41: #{tpu_custom_call.1} parent=5 // pred_check
        %p1825 = pneg %p1824
      $region42: #{tpu_custom_call.1} parent=5 // pred_check_branch
        %1827 = sbr.rel (%p1825) target = $region44
      $region43: #{tpu_custom_call.1} parent=5 // pred_region
        %s1828 = ssub.s32 %s13, 2
        // Predicated region
        $region45: #{tpu_custom_call.1} parent=43 // pred_check
          %p1829 = pneg %p131
        $region46: #{tpu_custom_call.1} parent=43 // pred_check_branch
          %1831 = sbr.rel (%p1829) target = $region48
        $region47: #{tpu_custom_call.1} parent=43 // pred_region
          %s1832 = sand.u32 %s116, 1
          %s1833 = scalar_lea.sflag [#allocation3], %s1832
          %s1834 = sand.u32 %s116, 1
          %s1835 = smul.addr %s1834, 128
          %s1836 = scalar_lea.vmem [#allocation2], %s1835
          %1837 = dma.done %s1833, 2048
        $region48: #{tpu_custom_call.1} parent=43 // pred_fallthru
          _
      $region44: #{tpu_custom_call.1} parent=5 // pred_fallthru
        _
    $region6: #{tpu_custom_call.1} parent=1 // loop_footer
      %s17 = sadd.s32 1, %s13
    $region7: #{tpu_custom_call.1} parent=1 // loop_footer_branch
      %12 = sbr.rel target = $region3
    $region8: #{tpu_custom_call.1} parent=1 // loop_exit
      _
    %1838 = vsyncpa [#allocation3], 1
    %s1839 = scalar_lea.sflag [#allocation3], 1
    %1840 = vsyncpa %s1839, 1

</llo_original>
